<compile_context>
chip_gen: v5e
topology: v5e:2x2
jax: 0.10.0
libtpu: 0.0.40
codegen_flags: <defaults>
</compile_context>

<pallas_src>
import jax
import jax.numpy as jnp
from jax.experimental import pallas as pl
from jax.experimental.pallas import tpu as pltpu

ND = 512           # hidden width fixed in the module
LN_EPS = 1e-5      # PyTorch LayerNorm default eps
NEG_SLOPE = 0.2    # LeakyReLU negative slope
LANE = 128


def _round_up(x, m):
    return (x + m - 1) // m * m


def _cdiv(a, b):
    return -(-a // b)


# ----------------------------- kernel ------------------------------------- #

def _linear(h_bf16, w_ref, b_ref):
    # bf16 MXU operands, f32 accumulation; bias added in f32.
    return jnp.dot(h_bf16, w_ref[...], preferred_element_type=jnp.float32) + b_ref[...]


def _ln_leaky_relu_bf16(h_f32, g_ref, b_ref):
    # Two-pass (stable) LayerNorm in f32, gamma folded into the rsqrt scale,
    # LeakyReLU(0.2) fused on top.  Cast to bf16 on the way out so the live
    # inter-layer activation is half-width (cuts vreg pressure / spill bytes).
    mu = jnp.mean(h_f32, axis=-1, keepdims=True)
    xc = h_f32 - mu
    var = jnp.mean(xc * xc, axis=-1, keepdims=True)
    scale = jax.lax.rsqrt(var + LN_EPS) * g_ref[...]
    y = xc * scale + b_ref[...]
    y = jnp.where(y > 0, y, NEG_SLOPE * y)
    return y.astype(jnp.bfloat16)


def length_estimator_kernel(
    x_ref,
    w1, b1, g1, be1,
    w2, b2, g2, be2,
    w3, b3, g3, be3,
    w4, b4,
    o_ref,
):
    # x_ref is already bf16 (cast in the wrapper) -> straight to the MXU.
    h = _ln_leaky_relu_bf16(_linear(x_ref[...], w1, b1), g1, be1)
    # TODO(synk): nn.Dropout(0.2) is identity in eval mode; train-mode dropout not applied.
    h = _ln_leaky_relu_bf16(_linear(h, w2, b2), g2, be2)
    h = _ln_leaky_relu_bf16(_linear(h, w3, b3), g3, be3)
    o_ref[...] = _linear(h, w4, b4).astype(o_ref.dtype)


# ----------------------------- one-time weight prep ------------------------ #

def prepare_params(params):
    """One-time preprocessing: cast Linear weights to bf16 MXU operands and pad the
    last layer's N (and its bias) to a 128-lane multiple (zero columns -> exact
    result; the wrapper slices them off).  Call once, reuse across forward calls."""
    d_in = params["w1"].shape[0]
    d_out = params["w4"].shape[1]
    d_out_p = _round_up(d_out, LANE)
    bf16 = lambda w: w.astype(jnp.bfloat16)

    w4 = jnp.zeros((ND // 4, d_out_p), jnp.bfloat16).at[:, :d_out].set(bf16(params["w4"]))
    b4 = jnp.zeros((1, d_out_p), jnp.float32).at[:, :d_out].set(params["b4"])

    weights = (
        bf16(params["w1"]), params["b1"], params["g1"], params["be1"],
        bf16(params["w2"]), params["b2"], params["g2"], params["be2"],
        bf16(params["w3"]), params["b3"], params["g3"], params["be3"],
        w4, b4,
    )
    weight_bytes = sum(int(w.size) * w.dtype.itemsize for w in weights)
    return {"weights": weights, "d_in": d_in, "d_out": d_out,
            "d_out_p": d_out_p, "weight_bytes": weight_bytes}


# ----------------------------- tiling heuristics ---------------------------- #

def _chip_flavor():
    try:
        kind = jax.devices()[0].device_kind.lower()
    except (IndexError, AttributeError, RuntimeError):
        return "v6e"
    if "v5 lite" in kind or "v5e" in kind or "v5lite" in kind:
        return "v5e"
    if "v7" in kind or "tpu7" in kind or "7x" in kind:
        return "v7x"
    return "v6e"  # v6e-like default: single sequential TensorCore per chip


def _pick_batch_tile(B, flavor):
    b16 = _round_up(max(B, 16), 16)          # bf16 sublane packing = 16 rows
    if flavor == "v5e":
        cap, min_tiles = 128, 1              # 128 rows already fill v5e's 4x128 MXU pass
    elif flavor == "v7x":
        cap, min_tiles = 512, (2 if b16 >= 32 else 1)  # equal halves for the 2 TCs
    else:                                    # v6e / default: one big tile, no forced split
        cap, min_tiles = 256, 1
    n_tiles = max(min_tiles, _cdiv(b16, cap))
    return _round_up(_cdiv(b16, n_tiles), 16)


def _vmem_limit_bytes(batch_tile, d_in, d_out_p, weight_bytes):
    x_tile = batch_tile * d_in * 2           # bf16 input tile
    o_tile = batch_tile * d_out_p * 4        # f32 output tile
    act = batch_tile * ND * 4 * 3            # f32 LN temps + bf16 hiddens (generous)
    need = 2 * weight_bytes + 2 * (x_tile + o_tile) + act
    return int(min(32 << 20, max(8 << 20, 2 * need + (2 << 20))))


# ----------------------------- forward wrapper ------------------------------ #

def length_estimator_forward(text_emb, prepared, *, batch_tile=None):
    """text_emb: (B, input_size) float32.  prepared: output of prepare_params()."""
    B, d_in = text_emb.shape
    assert d_in == prepared["d_in"], "input width mismatch vs prepared params"
    d_out, d_out_p = prepared["d_out"], prepared["d_out_p"]
    weights = prepared["weights"]

    flavor = _chip_flavor()
    if batch_tile is None:
        batch_tile = _pick_batch_tile(B, flavor)
    else:
        batch_tile = _round_up(batch_tile, 16)
    B_p = _round_up(max(B, batch_tile), batch_tile)

    # Only per-call prep: bf16 cast (halves the x DMA) + batch padding to the tile grid.
    xb = text_emb.astype(jnp.bfloat16)
    if B_p != B:
        xb = jnp.pad(xb, ((0, B_p - B), (0, 0)))

    # Constant-index full-array blocks for all weights/biases/LN params.
    weight_specs = [
        pl.BlockSpec(w.shape, lambda i, _r=w.ndim: (0,) * _r) for w in weights
    ]

    out = pl.pallas_call(
        length_estimator_kernel,
        out_shape=jax.ShapeDtypeStruct((B_p, d_out_p), jnp.float32),
        grid_spec=pltpu.PrefetchScalarGridSpec(
            num_scalar_prefetch=0,
            grid=(B_p // batch_tile,),
            in_specs=[pl.BlockSpec((batch_tile, d_in), lambda i: (i, 0))] + weight_specs,
            out_specs=pl.BlockSpec((batch_tile, d_out_p), lambda i: (i, 0)),
        ),
        compiler_params=pltpu.CompilerParams(
            dimension_semantics=("parallel",),
            vmem_limit_bytes=_vmem_limit_bytes(
                batch_tile, d_in, d_out_p, prepared["weight_bytes"]),
        ),
    )(xb, *weights)

    return out[:B, :d_out]


# ----------------------------- params & references -------------------------- #

def init_params(key, input_size, output_size):
    """Matches LengthEstimator.__init_weights: Linear W ~ N(0, 0.02), b = 0,
    LayerNorm weight = 1, bias = 0.  Weights stored (in_features, out_features)."""
    nd = ND
    dims = [(input_size, nd), (nd, nd // 2), (nd // 2, nd // 4), (nd // 4, output_size)]
    keys = jax.random.split(key, 4)
    params = {}
    for idx, ((din, dout), k) in enumerate(zip(dims, keys), start=1):
        params[f"w{idx}"] = 0.02 * jax.random.normal(k, (din, dout), dtype=jnp.float32)
        params[f"b{idx}"] = jnp.zeros((1, dout), dtype=jnp.float32)
    for idx, dout in enumerate([nd, nd // 2, nd // 4], start=1):
        params[f"g{idx}"] = jnp.ones((1, dout), dtype=jnp.float32)
        params[f"be{idx}"] = jnp.zeros((1, dout), dtype=jnp.float32)
    return params


def _ln_ref(h, g, b):
    mu = jnp.mean(h, -1, keepdims=True)
    var = jnp.mean((h - mu) ** 2, -1, keepdims=True)
    return (h - mu) / jnp.sqrt(var + LN_EPS) * g + b


def _lrelu_ref(h):
    return jnp.where(h > 0, h, NEG_SLOPE * h)


def reference_forward_f32(x, p):
    """Pure-JAX f32 reference (eval mode)."""
    h = _lrelu_ref(_ln_ref(x @ p["w1"] + p["b1"], p["g1"], p["be1"]))
    h = _lrelu_ref(_ln_ref(h @ p["w2"] + p["b2"], p["g2"], p["be2"]))
    h = _lrelu_ref(_ln_ref(h @ p["w3"] + p["b3"], p["g3"], p["be3"]))
    return h @ p["w4"] + p["b4"]


def reference_forward_bf16(x, p):
    """Reference with the kernel's numerics: bf16 matmul operands, f32 accumulation,
    LN/LeakyReLU in f32, hidden cast to bf16 before each matmul."""
    def mm(h, w, b):
        return jnp.dot(h.astype(jnp.bfloat16), w.astype(jnp.bfloat16),
                       preferred_element_type=jnp.float32) + b
    h = _lrelu_ref(_ln_ref(mm(x, p["w1"], p["b1"]), p["g1"], p["be1"]))
    h = _lrelu_ref(_ln_ref(mm(h, p["w2"], p["b2"]), p["g2"], p["be2"]))
    h = _lrelu_ref(_ln_ref(mm(h, p["w3"], p["b3"]), p["g3"], p["be3"]))
    return mm(h, p["w4"], p["b4"])


if __name__ == "__main__":
    key = jax.random.PRNGKey(0)
    k_param, k_x = jax.random.split(key)

    batch = 8
    input_size = 32
    output_size = 8

    params = init_params(k_param, input_size, output_size)
    text_emb = jax.random.normal(k_x, (batch, input_size), dtype=jnp.float32)

    prepared = prepare_params(params)           # one-time weight preprocessing
    out = length_estimator_forward(text_emb, prepared)
    out = jax.block_until_ready(out)
    assert out.shape == (batch, output_size)

    # Strict check vs a reference with matching bf16-matmul numerics.
    ref_bf16 = reference_forward_bf16(text_emb, params)
    assert jnp.allclose(out, ref_bf16, atol=2e-3, rtol=2e-3), "mismatch vs bf16 reference"

    # Loose sanity check vs the pure-f32 reference (bf16 operands introduce ~1e-3 drift).
    ref_f32 = reference_forward_f32(text_emb, params)
    assert jnp.allclose(out, ref_f32, atol=5e-2, rtol=5e-2), "mismatch vs f32 reference"

    print("KERNEL_OK")
</pallas_src>

<mosaic_0001>
module attributes {stable_mosaic.version = 11 : i64} {
  func.func @length_estimator_kernel(%arg0: i32, %arg1: memref<16x32xbf16, #tpu.memory_space<vmem>>, %arg2: memref<32x512xbf16, #tpu.memory_space<vmem>>, %arg3: memref<1x512xf32, #tpu.memory_space<vmem>>, %arg4: memref<1x512xf32, #tpu.memory_space<vmem>>, %arg5: memref<1x512xf32, #tpu.memory_space<vmem>>, %arg6: memref<512x256xbf16, #tpu.memory_space<vmem>>, %arg7: memref<1x256xf32, #tpu.memory_space<vmem>>, %arg8: memref<1x256xf32, #tpu.memory_space<vmem>>, %arg9: memref<1x256xf32, #tpu.memory_space<vmem>>, %arg10: memref<256x128xbf16, #tpu.memory_space<vmem>>, %arg11: memref<1x128xf32, #tpu.memory_space<vmem>>, %arg12: memref<1x128xf32, #tpu.memory_space<vmem>>, %arg13: memref<1x128xf32, #tpu.memory_space<vmem>>, %arg14: memref<128x128xbf16, #tpu.memory_space<vmem>>, %arg15: memref<1x128xf32, #tpu.memory_space<vmem>>, %arg16: memref<16x128xf32, #tpu.memory_space<vmem>>) attributes {dimension_semantics = [#tpu.dimension_semantics<parallel>], iteration_bounds = array<i64: 1>, scalar_prefetch = 0 : i64, scratch_operands = 0 : i64, tpu.core_type = #tpu.core_type<tc>, window_params = [{transform_indices = @transform_0, window_bounds = array<i64: 16, 32>}, {pipeline_mode = #tpu.pipeline_mode<synchronous>, transform_indices = @transform_1, window_bounds = array<i64: 32, 512>}, {pipeline_mode = #tpu.pipeline_mode<synchronous>, transform_indices = @transform_2, window_bounds = array<i64: 1, 512>}, {pipeline_mode = #tpu.pipeline_mode<synchronous>, transform_indices = @transform_3, window_bounds = array<i64: 1, 512>}, {pipeline_mode = #tpu.pipeline_mode<synchronous>, transform_indices = @transform_4, window_bounds = array<i64: 1, 512>}, {pipeline_mode = #tpu.pipeline_mode<synchronous>, transform_indices = @transform_5, window_bounds = array<i64: 512, 256>}, {pipeline_mode = #tpu.pipeline_mode<synchronous>, transform_indices = @transform_6, window_bounds = array<i64: 1, 256>}, {pipeline_mode = #tpu.pipeline_mode<synchronous>, transform_indices = @transform_7, window_bounds = array<i64: 1, 256>}, {pipeline_mode = #tpu.pipeline_mode<synchronous>, transform_indices = @transform_8, window_bounds = array<i64: 1, 256>}, {pipeline_mode = #tpu.pipeline_mode<synchronous>, transform_indices = @transform_9, window_bounds = array<i64: 256, 128>}, {pipeline_mode = #tpu.pipeline_mode<synchronous>, transform_indices = @transform_10, window_bounds = array<i64: 1, 128>}, {pipeline_mode = #tpu.pipeline_mode<synchronous>, transform_indices = @transform_11, window_bounds = array<i64: 1, 128>}, {pipeline_mode = #tpu.pipeline_mode<synchronous>, transform_indices = @transform_12, window_bounds = array<i64: 1, 128>}, {pipeline_mode = #tpu.pipeline_mode<synchronous>, transform_indices = @transform_13, window_bounds = array<i64: 128, 128>}, {pipeline_mode = #tpu.pipeline_mode<synchronous>, transform_indices = @transform_14, window_bounds = array<i64: 1, 128>}, {transform_indices = @transform_15, window_bounds = array<i64: 16, 128>}]} {
    %c0 = arith.constant 0 : index
    %c0_0 = arith.constant 0 : index
    %0 = vector.load %arg1[%c0, %c0_0] : memref<16x32xbf16, #tpu.memory_space<vmem>>, vector<16x32xbf16>
    %c0_1 = arith.constant 0 : index
    %c0_2 = arith.constant 0 : index
    %1 = vector.load %arg2[%c0_1, %c0_2] : memref<32x512xbf16, #tpu.memory_space<vmem>>, vector<32x512xbf16>
    %cst = arith.constant dense<0.000000e+00> : vector<16x512xf32>
    %2 = tpu.matmul %0, %1, %cst {dimension_numbers = #tpu.dot_dimension_numbers<[1], [0], [0], [1], [0, 0, 1, 1], [], []>} : vector<16x32xbf16>, vector<32x512xbf16>, vector<16x512xf32> -> vector<16x512xf32>
    %c0_3 = arith.constant 0 : index
    %c0_4 = arith.constant 0 : index
    %3 = vector.load %arg3[%c0_3, %c0_4] : memref<1x512xf32, #tpu.memory_space<vmem>>, vector<1x512xf32>
    %4 = vector.broadcast %3 : vector<1x512xf32> to vector<16x512xf32>
    %5 = arith.addf %2, %4 : vector<16x512xf32>
    %cst_5 = arith.constant dense<0.000000e+00> : vector<16xf32>
    %6 = vector.multi_reduction <add>, %5, %cst_5 [1] : vector<16x512xf32> to vector<16xf32>
    %7 = vector.shape_cast %6 : vector<16xf32> to vector<16x1xf32>
    %cst_6 = arith.constant 5.120000e+02 : f32
    %8 = vector.broadcast %cst_6 : f32 to vector<16x1xf32>
    %9 = arith.divf %7, %8 : vector<16x1xf32>
    %10 = vector.broadcast %9 : vector<16x1xf32> to vector<16x512xf32>
    %11 = arith.subf %5, %10 : vector<16x512xf32>
    %12 = arith.mulf %11, %11 : vector<16x512xf32>
    %cst_7 = arith.constant dense<0.000000e+00> : vector<16xf32>
    %13 = vector.multi_reduction <add>, %12, %cst_7 [1] : vector<16x512xf32> to vector<16xf32>
    %14 = vector.shape_cast %13 : vector<16xf32> to vector<16x1xf32>
    %cst_8 = arith.constant 5.120000e+02 : f32
    %15 = vector.broadcast %cst_8 : f32 to vector<16x1xf32>
    %16 = arith.divf %14, %15 : vector<16x1xf32>
    %cst_9 = arith.constant 9.99999974E-6 : f32
    %17 = vector.broadcast %cst_9 : f32 to vector<16x1xf32>
    %18 = arith.addf %16, %17 : vector<16x1xf32>
    %19 = math.rsqrt %18 : vector<16x1xf32>
    %c0_10 = arith.constant 0 : index
    %c0_11 = arith.constant 0 : index
    %20 = vector.load %arg4[%c0_10, %c0_11] : memref<1x512xf32, #tpu.memory_space<vmem>>, vector<1x512xf32>
    %21 = vector.broadcast %19 : vector<16x1xf32> to vector<16x512xf32>
    %22 = vector.broadcast %20 : vector<1x512xf32> to vector<16x512xf32>
    %23 = arith.mulf %21, %22 : vector<16x512xf32>
    %24 = arith.mulf %11, %23 : vector<16x512xf32>
    %c0_12 = arith.constant 0 : index
    %c0_13 = arith.constant 0 : index
    %25 = vector.load %arg5[%c0_12, %c0_13] : memref<1x512xf32, #tpu.memory_space<vmem>>, vector<1x512xf32>
    %26 = vector.broadcast %25 : vector<1x512xf32> to vector<16x512xf32>
    %27 = arith.addf %24, %26 : vector<16x512xf32>
    %cst_14 = arith.constant 0.000000e+00 : f32
    %28 = vector.broadcast %cst_14 : f32 to vector<16x512xf32>
    %29 = arith.cmpf ogt, %27, %28 : vector<16x512xf32>
    %cst_15 = arith.constant 2.000000e-01 : f32
    %30 = vector.broadcast %cst_15 : f32 to vector<16x512xf32>
    %31 = arith.mulf %30, %27 : vector<16x512xf32>
    %32 = arith.select %29, %27, %31 : vector<16x512xi1>, vector<16x512xf32>
    %33 = arith.truncf %32 : vector<16x512xf32> to vector<16x512xbf16>
    %c0_16 = arith.constant 0 : index
    %c0_17 = arith.constant 0 : index
    %34 = vector.load %arg6[%c0_16, %c0_17] : memref<512x256xbf16, #tpu.memory_space<vmem>>, vector<512x256xbf16>
    %cst_18 = arith.constant dense<0.000000e+00> : vector<16x256xf32>
    %35 = tpu.matmul %33, %34, %cst_18 {dimension_numbers = #tpu.dot_dimension_numbers<[1], [0], [0], [1], [0, 0, 1, 1], [], []>} : vector<16x512xbf16>, vector<512x256xbf16>, vector<16x256xf32> -> vector<16x256xf32>
    %c0_19 = arith.constant 0 : index
    %c0_20 = arith.constant 0 : index
    %36 = vector.load %arg7[%c0_19, %c0_20] : memref<1x256xf32, #tpu.memory_space<vmem>>, vector<1x256xf32>
    %37 = vector.broadcast %36 : vector<1x256xf32> to vector<16x256xf32>
    %38 = arith.addf %35, %37 : vector<16x256xf32>
    %cst_21 = arith.constant dense<0.000000e+00> : vector<16xf32>
    %39 = vector.multi_reduction <add>, %38, %cst_21 [1] : vector<16x256xf32> to vector<16xf32>
    %40 = vector.shape_cast %39 : vector<16xf32> to vector<16x1xf32>
    %cst_22 = arith.constant 2.560000e+02 : f32
    %41 = vector.broadcast %cst_22 : f32 to vector<16x1xf32>
    %42 = arith.divf %40, %41 : vector<16x1xf32>
    %43 = vector.broadcast %42 : vector<16x1xf32> to vector<16x256xf32>
    %44 = arith.subf %38, %43 : vector<16x256xf32>
    %45 = arith.mulf %44, %44 : vector<16x256xf32>
    %cst_23 = arith.constant dense<0.000000e+00> : vector<16xf32>
    %46 = vector.multi_reduction <add>, %45, %cst_23 [1] : vector<16x256xf32> to vector<16xf32>
    %47 = vector.shape_cast %46 : vector<16xf32> to vector<16x1xf32>
    %cst_24 = arith.constant 2.560000e+02 : f32
    %48 = vector.broadcast %cst_24 : f32 to vector<16x1xf32>
    %49 = arith.divf %47, %48 : vector<16x1xf32>
    %cst_25 = arith.constant 9.99999974E-6 : f32
    %50 = vector.broadcast %cst_25 : f32 to vector<16x1xf32>
    %51 = arith.addf %49, %50 : vector<16x1xf32>
    %52 = math.rsqrt %51 : vector<16x1xf32>
    %c0_26 = arith.constant 0 : index
    %c0_27 = arith.constant 0 : index
    %53 = vector.load %arg8[%c0_26, %c0_27] : memref<1x256xf32, #tpu.memory_space<vmem>>, vector<1x256xf32>
    %54 = vector.broadcast %52 : vector<16x1xf32> to vector<16x256xf32>
    %55 = vector.broadcast %53 : vector<1x256xf32> to vector<16x256xf32>
    %56 = arith.mulf %54, %55 : vector<16x256xf32>
    %57 = arith.mulf %44, %56 : vector<16x256xf32>
    %c0_28 = arith.constant 0 : index
    %c0_29 = arith.constant 0 : index
    %58 = vector.load %arg9[%c0_28, %c0_29] : memref<1x256xf32, #tpu.memory_space<vmem>>, vector<1x256xf32>
    %59 = vector.broadcast %58 : vector<1x256xf32> to vector<16x256xf32>
    %60 = arith.addf %57, %59 : vector<16x256xf32>
    %cst_30 = arith.constant 0.000000e+00 : f32
    %61 = vector.broadcast %cst_30 : f32 to vector<16x256xf32>
    %62 = arith.cmpf ogt, %60, %61 : vector<16x256xf32>
    %cst_31 = arith.constant 2.000000e-01 : f32
    %63 = vector.broadcast %cst_31 : f32 to vector<16x256xf32>
    %64 = arith.mulf %63, %60 : vector<16x256xf32>
    %65 = arith.select %62, %60, %64 : vector<16x256xi1>, vector<16x256xf32>
    %66 = arith.truncf %65 : vector<16x256xf32> to vector<16x256xbf16>
    %c0_32 = arith.constant 0 : index
    %c0_33 = arith.constant 0 : index
    %67 = vector.load %arg10[%c0_32, %c0_33] : memref<256x128xbf16, #tpu.memory_space<vmem>>, vector<256x128xbf16>
    %cst_34 = arith.constant dense<0.000000e+00> : vector<16x128xf32>
    %68 = tpu.matmul %66, %67, %cst_34 {dimension_numbers = #tpu.dot_dimension_numbers<[1], [0], [0], [1], [0, 0, 1, 1], [], []>} : vector<16x256xbf16>, vector<256x128xbf16>, vector<16x128xf32> -> vector<16x128xf32>
    %c0_35 = arith.constant 0 : index
    %c0_36 = arith.constant 0 : index
    %69 = vector.load %arg11[%c0_35, %c0_36] : memref<1x128xf32, #tpu.memory_space<vmem>>, vector<1x128xf32>
    %70 = vector.broadcast %69 : vector<1x128xf32> to vector<16x128xf32>
    %71 = arith.addf %68, %70 : vector<16x128xf32>
    %cst_37 = arith.constant dense<0.000000e+00> : vector<16xf32>
    %72 = vector.multi_reduction <add>, %71, %cst_37 [1] : vector<16x128xf32> to vector<16xf32>
    %73 = vector.shape_cast %72 : vector<16xf32> to vector<16x1xf32>
    %cst_38 = arith.constant 1.280000e+02 : f32
    %74 = vector.broadcast %cst_38 : f32 to vector<16x1xf32>
    %75 = arith.divf %73, %74 : vector<16x1xf32>
    %76 = vector.broadcast %75 : vector<16x1xf32> to vector<16x128xf32>
    %77 = arith.subf %71, %76 : vector<16x128xf32>
    %78 = arith.mulf %77, %77 : vector<16x128xf32>
    %cst_39 = arith.constant dense<0.000000e+00> : vector<16xf32>
    %79 = vector.multi_reduction <add>, %78, %cst_39 [1] : vector<16x128xf32> to vector<16xf32>
    %80 = vector.shape_cast %79 : vector<16xf32> to vector<16x1xf32>
    %cst_40 = arith.constant 1.280000e+02 : f32
    %81 = vector.broadcast %cst_40 : f32 to vector<16x1xf32>
    %82 = arith.divf %80, %81 : vector<16x1xf32>
    %cst_41 = arith.constant 9.99999974E-6 : f32
    %83 = vector.broadcast %cst_41 : f32 to vector<16x1xf32>
    %84 = arith.addf %82, %83 : vector<16x1xf32>
    %85 = math.rsqrt %84 : vector<16x1xf32>
    %c0_42 = arith.constant 0 : index
    %c0_43 = arith.constant 0 : index
    %86 = vector.load %arg12[%c0_42, %c0_43] : memref<1x128xf32, #tpu.memory_space<vmem>>, vector<1x128xf32>
    %87 = vector.broadcast %85 : vector<16x1xf32> to vector<16x128xf32>
    %88 = vector.broadcast %86 : vector<1x128xf32> to vector<16x128xf32>
    %89 = arith.mulf %87, %88 : vector<16x128xf32>
    %90 = arith.mulf %77, %89 : vector<16x128xf32>
    %c0_44 = arith.constant 0 : index
    %c0_45 = arith.constant 0 : index
    %91 = vector.load %arg13[%c0_44, %c0_45] : memref<1x128xf32, #tpu.memory_space<vmem>>, vector<1x128xf32>
    %92 = vector.broadcast %91 : vector<1x128xf32> to vector<16x128xf32>
    %93 = arith.addf %90, %92 : vector<16x128xf32>
    %cst_46 = arith.constant 0.000000e+00 : f32
    %94 = vector.broadcast %cst_46 : f32 to vector<16x128xf32>
    %95 = arith.cmpf ogt, %93, %94 : vector<16x128xf32>
    %cst_47 = arith.constant 2.000000e-01 : f32
    %96 = vector.broadcast %cst_47 : f32 to vector<16x128xf32>
    %97 = arith.mulf %96, %93 : vector<16x128xf32>
    %98 = arith.select %95, %93, %97 : vector<16x128xi1>, vector<16x128xf32>
    %99 = arith.truncf %98 : vector<16x128xf32> to vector<16x128xbf16>
    %c0_48 = arith.constant 0 : index
    %c0_49 = arith.constant 0 : index
    %100 = vector.load %arg14[%c0_48, %c0_49] : memref<128x128xbf16, #tpu.memory_space<vmem>>, vector<128x128xbf16>
    %cst_50 = arith.constant dense<0.000000e+00> : vector<16x128xf32>
    %101 = tpu.matmul %99, %100, %cst_50 {dimension_numbers = #tpu.dot_dimension_numbers<[1], [0], [0], [1], [0, 0, 1, 1], [], []>} : vector<16x128xbf16>, vector<128x128xbf16>, vector<16x128xf32> -> vector<16x128xf32>
    %c0_51 = arith.constant 0 : index
    %c0_52 = arith.constant 0 : index
    %102 = vector.load %arg15[%c0_51, %c0_52] : memref<1x128xf32, #tpu.memory_space<vmem>>, vector<1x128xf32>
    %103 = vector.broadcast %102 : vector<1x128xf32> to vector<16x128xf32>
    %104 = arith.addf %101, %103 : vector<16x128xf32>
    %c0_53 = arith.constant 0 : index
    %c0_54 = arith.constant 0 : index
    %105 = vector.load %arg16[%c0_53, %c0_54] : memref<16x128xf32, #tpu.memory_space<vmem>>, vector<16x128xf32>
    tpu.vector_store %arg16[%c0_53, %c0_54], %104 {strides = array<i32>} : memref<16x128xf32, #tpu.memory_space<vmem>>, vector<16x128xf32>,
    return
  }
  func.func @transform_0(%arg0: i32) -> (i32, i32) {
    %c0_i32 = arith.constant 0 : i32
    %c0_i32_0 = arith.constant 0 : i32
    return %arg0, %c0_i32 : i32, i32
  }
  func.func @transform_1(%arg0: i32) -> (i32, i32) {
    %c0_i32 = arith.constant 0 : i32
    %c0_i32_0 = arith.constant 0 : i32
    %c0_i32_1 = arith.constant 0 : i32
    return %c0_i32, %c0_i32_0 : i32, i32
  }
  func.func @transform_2(%arg0: i32) -> (i32, i32) {
    %c0_i32 = arith.constant 0 : i32
    %c0_i32_0 = arith.constant 0 : i32
    %c0_i32_1 = arith.constant 0 : i32
    return %c0_i32, %c0_i32_0 : i32, i32
  }
  func.func @transform_3(%arg0: i32) -> (i32, i32) {
    %c0_i32 = arith.constant 0 : i32
    %c0_i32_0 = arith.constant 0 : i32
    %c0_i32_1 = arith.constant 0 : i32
    return %c0_i32, %c0_i32_0 : i32, i32
  }
  func.func @transform_4(%arg0: i32) -> (i32, i32) {
    %c0_i32 = arith.constant 0 : i32
    %c0_i32_0 = arith.constant 0 : i32
    %c0_i32_1 = arith.constant 0 : i32
    return %c0_i32, %c0_i32_0 : i32, i32
  }
  func.func @transform_5(%arg0: i32) -> (i32, i32) {
    %c0_i32 = arith.constant 0 : i32
    %c0_i32_0 = arith.constant 0 : i32
    %c0_i32_1 = arith.constant 0 : i32
    return %c0_i32, %c0_i32_0 : i32, i32
  }
  func.func @transform_6(%arg0: i32) -> (i32, i32) {
    %c0_i32 = arith.constant 0 : i32
    %c0_i32_0 = arith.constant 0 : i32
    %c0_i32_1 = arith.constant 0 : i32
    return %c0_i32, %c0_i32_0 : i32, i32
  }
  func.func @transform_7(%arg0: i32) -> (i32, i32) {
    %c0_i32 = arith.constant 0 : i32
    %c0_i32_0 = arith.constant 0 : i32
    %c0_i32_1 = arith.constant 0 : i32
    return %c0_i32, %c0_i32_0 : i32, i32
  }
  func.func @transform_8(%arg0: i32) -> (i32, i32) {
    %c0_i32 = arith.constant 0 : i32
    %c0_i32_0 = arith.constant 0 : i32
    %c0_i32_1 = arith.constant 0 : i32
    return %c0_i32, %c0_i32_0 : i32, i32
  }
  func.func @transform_9(%arg0: i32) -> (i32, i32) {
    %c0_i32 = arith.constant 0 : i32
    %c0_i32_0 = arith.constant 0 : i32
    %c0_i32_1 = arith.constant 0 : i32
    return %c0_i32, %c0_i32_0 : i32, i32
  }
  func.func @transform_10(%arg0: i32) -> (i32, i32) {
    %c0_i32 = arith.constant 0 : i32
    %c0_i32_0 = arith.constant 0 : i32
    %c0_i32_1 = arith.constant 0 : i32
    return %c0_i32, %c0_i32_0 : i32, i32
  }
  func.func @transform_11(%arg0: i32) -> (i32, i32) {
    %c0_i32 = arith.constant 0 : i32
    %c0_i32_0 = arith.constant 0 : i32
    %c0_i32_1 = arith.constant 0 : i32
    return %c0_i32, %c0_i32_0 : i32, i32
  }
  func.func @transform_12(%arg0: i32) -> (i32, i32) {
    %c0_i32 = arith.constant 0 : i32
    %c0_i32_0 = arith.constant 0 : i32
    %c0_i32_1 = arith.constant 0 : i32
    return %c0_i32, %c0_i32_0 : i32, i32
  }
  func.func @transform_13(%arg0: i32) -> (i32, i32) {
    %c0_i32 = arith.constant 0 : i32
    %c0_i32_0 = arith.constant 0 : i32
    %c0_i32_1 = arith.constant 0 : i32
    return %c0_i32, %c0_i32_0 : i32, i32
  }
  func.func @transform_14(%arg0: i32) -> (i32, i32) {
    %c0_i32 = arith.constant 0 : i32
    %c0_i32_0 = arith.constant 0 : i32
    %c0_i32_1 = arith.constant 0 : i32
    return %c0_i32, %c0_i32_0 : i32, i32
  }
  func.func @transform_15(%arg0: i32) -> (i32, i32) {
    %c0_i32 = arith.constant 0 : i32
    %c0_i32_0 = arith.constant 0 : i32
    return %arg0, %c0_i32 : i32, i32
  }
}

</mosaic_0001>

<llo_original>
// kernel: tpu_custom_call.1
$region0: #{tpu_custom_call.1}
  #allocation0 [shape = 'u32[]', space=smem, size = 0x4, offset = 0x4, fixed_abs, tag = 'smem constant byte address 0x4 - core index']
  #allocation1 [shape = 'u32[72,128]{1,0:T(1,128)}', space=vmem, size = 0x9000, scoped, tag = 'internal scratch']
  %s0 = inlined_call_operand.hbm [shape: bf16[16,32], index: 0, kind: input, shape index: {}]
  %s1 = inlined_call_operand.hbm [shape: bf16[32,512], index: 1, kind: input, shape index: {}]
  %s2 = inlined_call_operand.hbm [shape: f32[1,512], index: 2, kind: input, shape index: {}]
  %s3 = inlined_call_operand.hbm [shape: f32[1,512], index: 3, kind: input, shape index: {}]
  %s4 = inlined_call_operand.hbm [shape: f32[1,512], index: 4, kind: input, shape index: {}]
  %s5 = inlined_call_operand.hbm [shape: bf16[512,256], index: 5, kind: input, shape index: {}]
  %s6 = inlined_call_operand.vmem [shape: f32[1,256], index: 6, kind: input, shape index: {}]
  %s7 = inlined_call_operand.vmem [shape: f32[1,256], index: 7, kind: input, shape index: {}]
  %s8 = inlined_call_operand.vmem [shape: f32[1,256], index: 8, kind: input, shape index: {}]
  %s9 = inlined_call_operand.hbm [shape: bf16[256,128], index: 9, kind: input, shape index: {}]
  %s10 = inlined_call_operand.vmem [shape: f32[1,128], index: 10, kind: input, shape index: {}]
  %s11 = inlined_call_operand.vmem [shape: f32[1,128], index: 11, kind: input, shape index: {}]
  %s12 = inlined_call_operand.vmem [shape: f32[1,128], index: 12, kind: input, shape index: {}]
  %s13 = inlined_call_operand.hbm [shape: bf16[128,128], index: 13, kind: input, shape index: {}]
  %s14 = inlined_call_operand.vmem [shape: f32[1,128], index: 14, kind: input, shape index: {}]
  %s15 = inlined_call_operand.hbm [shape: f32[16,128], index: 15, kind: output, shape index: {}]
  %s16 = sld [smem:[#allocation0]]
  $region102: #{tpu_custom_call.1} parent=0
    _
  %s18 = ssub.s32 1, %s16
  %s19 = scalar_select 0, %s18, %s16
  $region1: #{tpu_custom_call.1} parent=0
    #allocation2 [shape = 'u8[4096]{0}', space=vmem, size = 0x1000, scoped, tag = 'input window, operand 0, single buffered']
    #allocation3 [shape = 's32[1]{0}', space=sflag, size = 0x4, scoped, tag = 'scoped memory for tpu_custom_call.1']
    #allocation4 [shape = 's32[1]{0}', space=sflag, size = 0x4, scoped, tag = 'scoped memory for tpu_custom_call.1']
    #allocation5 [shape = 'u8[32768]{0}', space=vmem, size = 0x8000, scoped, tag = 'input window, operand 1, single buffered']
    #allocation6 [shape = 's32[1]{0}', space=sflag, size = 0x4, scoped, tag = 'scoped memory for tpu_custom_call.1']
    #allocation7 [shape = 'u8[2048]{0}', space=vmem, size = 0x800, scoped, tag = 'input window, operand 2, single buffered']
    #allocation8 [shape = 'u8[2048]{0}', space=vmem, size = 0x800, scoped, tag = 'input window, operand 3, single buffered']
    #allocation9 [shape = 's32[1]{0}', space=sflag, size = 0x4, scoped, tag = 'scoped memory for tpu_custom_call.1']
    #allocation10 [shape = 'u8[2048]{0}', space=vmem, size = 0x800, scoped, tag = 'input window, operand 4, single buffered']
    #allocation11 [shape = 'u8[262144]{0}', space=vmem, size = 0x40000, scoped, tag = 'input window, operand 5, single buffered']
    #allocation12 [shape = 's32[1]{0}', space=sflag, size = 0x4, scoped, tag = 'scoped memory for tpu_custom_call.1']
    #allocation13 [shape = 'u8[65536]{0}', space=vmem, size = 0x10000, scoped, tag = 'input window, operand 9, single buffered']
    #allocation14 [shape = 'u8[32768]{0}', space=vmem, size = 0x8000, scoped, tag = 'input window, operand 13, single buffered']
    #allocation15 [shape = 's32[1]{0}', space=sflag, size = 0x4, scoped, tag = 'scoped memory for tpu_custom_call.1']
    #allocation16 [shape = 'u8[8192]{0}', space=vmem, size = 0x2000, scoped, tag = 'output window, operand 0, single buffered']
    %20 = vsyncpa [#allocation3], 0
    %21 = vsyncpa [#allocation6], 0
    %22 = vsyncpa [#allocation9], 0
    %23 = vsyncpa [#allocation12], 0
    %24 = vsyncpa [#allocation15], 0
    %25 = vsyncpa [#allocation4], 0
    // Predicated region
    $region2: #{tpu_custom_call.1} parent=1 // pred_check
      _
    $region3: #{tpu_custom_call.1} parent=1 // pred_check_branch
      %27 = sbr.rel (0) target = $region5
    $region4: #{tpu_custom_call.1} parent=1 // pred_region
      %29 = vsyncadd [#allocation3], 0
      %s30 = sshll.u32 %s0, 4
      %s31 = int_to_ptr.hbm [resolvable:$true] %s30
      %s32 = sshll.u32 [#allocation2], 4
      %s33 = int_to_ptr.vmem [resolvable:$true] %s32
      %38 = dma.hbm_to_vmem [thread:$0]  %s31, 128, %s33, [#allocation3], 64, 64, 4
    $region5: #{tpu_custom_call.1} parent=1 // pred_fallthru
      _
    // Predicated region
    $region6: #{tpu_custom_call.1} parent=1 // pred_check
      _
    $region7: #{tpu_custom_call.1} parent=1 // pred_check_branch
      %40 = sbr.rel (0) target = $region9
    $region8: #{tpu_custom_call.1} parent=1 // pred_region
      %42 = vsyncadd [#allocation6], 0
      %s43 = sshll.u32 %s1, 4
      %s44 = int_to_ptr.hbm [resolvable:$true] %s43
      %s45 = sshll.u32 [#allocation5], 4
      %s46 = int_to_ptr.vmem [resolvable:$true] %s45
      %51 = dma.hbm_to_vmem [thread:$0]  %s44, 1024, %s46, [#allocation6], 256, 256, 16
    $region9: #{tpu_custom_call.1} parent=1 // pred_fallthru
      _
    // Predicated region
    $region10: #{tpu_custom_call.1} parent=1 // pred_check
      _
    $region11: #{tpu_custom_call.1} parent=1 // pred_check_branch
      %53 = sbr.rel (0) target = $region13
    $region12: #{tpu_custom_call.1} parent=1 // pred_region
      %55 = vsyncadd [#allocation6], 0
      %s57 = sshll.u32 %s2, 4
      %s58 = int_to_ptr.hbm [resolvable:$true] %s57
      %s59 = sshll.u32 [#allocation7], 4
      %s60 = int_to_ptr.vmem [resolvable:$true] %s59
      %62 = dma.hbm_to_vmem [thread:$0]  %s58, 64, %s60, [#allocation6]
    $region13: #{tpu_custom_call.1} parent=1 // pred_fallthru
      _
    // Predicated region
    $region14: #{tpu_custom_call.1} parent=1 // pred_check
      _
    $region15: #{tpu_custom_call.1} parent=1 // pred_check_branch
      %64 = sbr.rel (0) target = $region17
    $region16: #{tpu_custom_call.1} parent=1 // pred_region
      %66 = vsyncadd [#allocation9], 0
      %s68 = sshll.u32 %s3, 4
      %s69 = int_to_ptr.hbm [resolvable:$true] %s68
      %s70 = sshll.u32 [#allocation8], 4
      %s71 = int_to_ptr.vmem [resolvable:$true] %s70
      %73 = dma.hbm_to_vmem [thread:$0]  %s69, 64, %s71, [#allocation9]
    $region17: #{tpu_custom_call.1} parent=1 // pred_fallthru
      _
    // Predicated region
    $region18: #{tpu_custom_call.1} parent=1 // pred_check
      _
    $region19: #{tpu_custom_call.1} parent=1 // pred_check_branch
      %75 = sbr.rel (0) target = $region21
    $region20: #{tpu_custom_call.1} parent=1 // pred_region
      %77 = vsyncadd [#allocation9], 0
      %s79 = sshll.u32 %s4, 4
      %s80 = int_to_ptr.hbm [resolvable:$true] %s79
      %s81 = sshll.u32 [#allocation10], 4
      %s82 = int_to_ptr.vmem [resolvable:$true] %s81
      %84 = dma.hbm_to_vmem [thread:$0]  %s80, 64, %s82, [#allocation9]
    $region21: #{tpu_custom_call.1} parent=1 // pred_fallthru
      _
    // Predicated region
    $region22: #{tpu_custom_call.1} parent=1 // pred_check
      _
    $region23: #{tpu_custom_call.1} parent=1 // pred_check_branch
      %86 = sbr.rel (0) target = $region25
    $region24: #{tpu_custom_call.1} parent=1 // pred_region
      %88 = vsyncadd [#allocation12], 0
      %s89 = sshll.u32 %s5, 4
      %s90 = int_to_ptr.hbm [resolvable:$true] %s89
      %s91 = sshll.u32 [#allocation11], 4
      %s92 = int_to_ptr.vmem [resolvable:$true] %s91
      %97 = dma.hbm_to_vmem [thread:$0]  %s90, 8192, %s92, [#allocation12], 128, 128, 8
    $region25: #{tpu_custom_call.1} parent=1 // pred_fallthru
      _
    // Predicated region
    $region26: #{tpu_custom_call.1} parent=1 // pred_check
      _
    $region27: #{tpu_custom_call.1} parent=1 // pred_check_branch
      %99 = sbr.rel (0) target = $region29
    $region28: #{tpu_custom_call.1} parent=1 // pred_region
      _
    $region29: #{tpu_custom_call.1} parent=1 // pred_fallthru
      _
    // Predicated region
    $region30: #{tpu_custom_call.1} parent=1 // pred_check
      _
    $region31: #{tpu_custom_call.1} parent=1 // pred_check_branch
      %101 = sbr.rel (0) target = $region33
    $region32: #{tpu_custom_call.1} parent=1 // pred_region
      _
    $region33: #{tpu_custom_call.1} parent=1 // pred_fallthru
      _
    // Predicated region
    $region34: #{tpu_custom_call.1} parent=1 // pred_check
      _
    $region35: #{tpu_custom_call.1} parent=1 // pred_check_branch
      %103 = sbr.rel (0) target = $region37
    $region36: #{tpu_custom_call.1} parent=1 // pred_region
      _
    $region37: #{tpu_custom_call.1} parent=1 // pred_fallthru
      _
    // Predicated region
    $region38: #{tpu_custom_call.1} parent=1 // pred_check
      _
    $region39: #{tpu_custom_call.1} parent=1 // pred_check_branch
      %105 = sbr.rel (0) target = $region41
    $region40: #{tpu_custom_call.1} parent=1 // pred_region
      %107 = vsyncadd [#allocation12], 0
      %s108 = sshll.u32 %s9, 4
      %s109 = int_to_ptr.hbm [resolvable:$true] %s108
      %s110 = sshll.u32 [#allocation13], 4
      %s111 = int_to_ptr.vmem [resolvable:$true] %s110
      %116 = dma.hbm_to_vmem [thread:$0]  %s109, 2048, %s111, [#allocation12], 64, 64, 4
    $region41: #{tpu_custom_call.1} parent=1 // pred_fallthru
      _
    // Predicated region
    $region42: #{tpu_custom_call.1} parent=1 // pred_check
      _
    $region43: #{tpu_custom_call.1} parent=1 // pred_check_branch
      %118 = sbr.rel (0) target = $region45
    $region44: #{tpu_custom_call.1} parent=1 // pred_region
      _
    $region45: #{tpu_custom_call.1} parent=1 // pred_fallthru
      _
    // Predicated region
    $region46: #{tpu_custom_call.1} parent=1 // pred_check
      _
    $region47: #{tpu_custom_call.1} parent=1 // pred_check_branch
      %120 = sbr.rel (0) target = $region49
    $region48: #{tpu_custom_call.1} parent=1 // pred_region
      _
    $region49: #{tpu_custom_call.1} parent=1 // pred_fallthru
      _
    // Predicated region
    $region50: #{tpu_custom_call.1} parent=1 // pred_check
      _
    $region51: #{tpu_custom_call.1} parent=1 // pred_check_branch
      %122 = sbr.rel (0) target = $region53
    $region52: #{tpu_custom_call.1} parent=1 // pred_region
      _
    $region53: #{tpu_custom_call.1} parent=1 // pred_fallthru
      _
    // Predicated region
    $region54: #{tpu_custom_call.1} parent=1 // pred_check
      _
    $region55: #{tpu_custom_call.1} parent=1 // pred_check_branch
      %124 = sbr.rel (0) target = $region57
    $region56: #{tpu_custom_call.1} parent=1 // pred_region
      %126 = vsyncadd [#allocation15], 0
      %s127 = sshll.u32 %s13, 4
      %s128 = int_to_ptr.hbm [resolvable:$true] %s127
      %s129 = sshll.u32 [#allocation14], 4
      %s130 = int_to_ptr.vmem [resolvable:$true] %s129
      %135 = dma.hbm_to_vmem [thread:$0]  %s128, 1024, %s130, [#allocation15], 64, 64, 4
    $region57: #{tpu_custom_call.1} parent=1 // pred_fallthru
      _
    // Predicated region
    $region58: #{tpu_custom_call.1} parent=1 // pred_check
      _
    $region59: #{tpu_custom_call.1} parent=1 // pred_check_branch
      %137 = sbr.rel (0) target = $region61
    $region60: #{tpu_custom_call.1} parent=1 // pred_region
      _
    $region61: #{tpu_custom_call.1} parent=1 // pred_fallthru
      _
    // Predicated region
    $region62: #{tpu_custom_call.1} parent=1 // pred_check
      _
    $region63: #{tpu_custom_call.1} parent=1 // pred_check_branch
      %139 = sbr.rel (0) target = $region65
    $region64: #{tpu_custom_call.1} parent=1 // pred_region
      %141 = dma.done [#allocation3], 128
    $region65: #{tpu_custom_call.1} parent=1 // pred_fallthru
      _
    // Predicated region
    $region66: #{tpu_custom_call.1} parent=1 // pred_check
      _
    $region67: #{tpu_custom_call.1} parent=1 // pred_check_branch
      %143 = sbr.rel (0) target = $region69
    $region68: #{tpu_custom_call.1} parent=1 // pred_region
      %145 = dma.done [#allocation6], 1024
    $region69: #{tpu_custom_call.1} parent=1 // pred_fallthru
      _
    // Predicated region
    $region70: #{tpu_custom_call.1} parent=1 // pred_check
      _
    $region71: #{tpu_custom_call.1} parent=1 // pred_check_branch
      %147 = sbr.rel (0) target = $region73
    $region72: #{tpu_custom_call.1} parent=1 // pred_region
      %149 = dma.done [#allocation6], 64
    $region73: #{tpu_custom_call.1} parent=1 // pred_fallthru
      _
    // Predicated region
    $region74: #{tpu_custom_call.1} parent=1 // pred_check
      _
    $region75: #{tpu_custom_call.1} parent=1 // pred_check_branch
      %151 = sbr.rel (0) target = $region77
    $region76: #{tpu_custom_call.1} parent=1 // pred_region
      %153 = dma.done [#allocation9], 64
    $region77: #{tpu_custom_call.1} parent=1 // pred_fallthru
      _
    // Predicated region
    $region78: #{tpu_custom_call.1} parent=1 // pred_check
      _
    $region79: #{tpu_custom_call.1} parent=1 // pred_check_branch
      %155 = sbr.rel (0) target = $region81
    $region80: #{tpu_custom_call.1} parent=1 // pred_region
      %157 = dma.done [#allocation9], 64
    $region81: #{tpu_custom_call.1} parent=1 // pred_fallthru
      _
    // Predicated region
    $region82: #{tpu_custom_call.1} parent=1 // pred_check
      _
    $region83: #{tpu_custom_call.1} parent=1 // pred_check_branch
      %159 = sbr.rel (0) target = $region85
    $region84: #{tpu_custom_call.1} parent=1 // pred_region
      %161 = dma.done [#allocation12], 8192
    $region85: #{tpu_custom_call.1} parent=1 // pred_fallthru
      _
    // Predicated region
    $region86: #{tpu_custom_call.1} parent=1 // pred_check
      _
    $region87: #{tpu_custom_call.1} parent=1 // pred_check_branch
      %163 = sbr.rel (0) target = $region89
    $region88: #{tpu_custom_call.1} parent=1 // pred_region
      %165 = dma.done [#allocation12], 2048
    $region89: #{tpu_custom_call.1} parent=1 // pred_fallthru
      _
    // Predicated region
    $region90: #{tpu_custom_call.1} parent=1 // pred_check
      _
    $region91: #{tpu_custom_call.1} parent=1 // pred_check_branch
      %167 = sbr.rel (0) target = $region93
    $region92: #{tpu_custom_call.1} parent=1 // pred_region
      %169 = dma.done [#allocation15], 1024
    $region93: #{tpu_custom_call.1} parent=1 // pred_fallthru
      _
    %v171 = vld [vmem:[#allocation2] sm:$0xf]
    %v172 = vld [vmem:[#allocation2 + $0x4] sm:$0xf]
    %v173 = vld [vmem:[#allocation5] sm:$0xff]
    %v174 = vld [vmem:[#allocation5 + $0x8] sm:$0xff]
    %v175 = vld [vmem:[#allocation5 + $0x10] sm:$0xff]
    %v176 = vld [vmem:[#allocation5 + $0x18] sm:$0xff]
    %v177 = vld [vmem:[#allocation5 + $0x20] sm:$0xff]
    %v178 = vld [vmem:[#allocation5 + $0x28] sm:$0xff]
    %v179 = vld [vmem:[#allocation5 + $0x30] sm:$0xff]
    %v180 = vld [vmem:[#allocation5 + $0x38] sm:$0xff]
    %v181 = vld [vmem:[#allocation7] sm:$0xf]
    %v183 = vperm.slane %v181, 0
    %v184 = vperm.slane %v181, 1
    %v185 = vperm.slane %v181, 2
    %v186 = vperm.slane %v181, 3
    %v193 = vunpack.c.l.b16 %v171
    %v194 = vunpack.c.l.b16 %v172
    %v195 = vpack.c.b16 %v194, %v193
    %v204 = vunpack.c.l.b16 %v173
    %v205 = vunpack.c.h.b16 %v173
    %v206 = vunpack.c.l.b16 %v174
    %v207 = vunpack.c.h.b16 %v174
    %v208 = vunpack.c.l.b16 %v175
    %v209 = vunpack.c.h.b16 %v175
    %v210 = vunpack.c.l.b16 %v176
    %v211 = vunpack.c.h.b16 %v176
    %v212 = vunpack.c.l.b16 %v177
    %v213 = vunpack.c.h.b16 %v177
    %v214 = vunpack.c.l.b16 %v178
    %v215 = vunpack.c.h.b16 %v178
    %v216 = vunpack.c.l.b16 %v179
    %v217 = vunpack.c.h.b16 %v179
    %v218 = vunpack.c.l.b16 %v180
    %v219 = vunpack.c.h.b16 %v180
    %v220 = vpack.c.b16 %v208, %v204
    %v221 = vpack.c.b16 %v209, %v205
    %v222 = vpack.c.b16 %v210, %v206
    %v223 = vpack.c.b16 %v211, %v207
    %v224 = vpack.c.b16 %v216, %v212
    %v225 = vpack.c.b16 %v217, %v213
    %v226 = vpack.c.b16 %v218, %v214
    %v227 = vpack.c.b16 %v219, %v215
    %vm236 = vcmask 261120
    %v238 = vsel %vm236, %v195, 0
    %240 = vmatpush.bf16.msra.mxu0 0
    %241 = vmatpush.bf16.msra.mxu0 0
    %242 = vmatpush.bf16.msra.mxu0 0
    %243 = vmatpush.bf16.msra.mxu0 0
    %244 = vmatpush.bf16.msra.mxu0 0
    %245 = vmatpush.bf16.msra.mxu0 0
    %246 = vmatpush.bf16.msra.mxu0 %v224
    %247 = vmatpush.bf16.msra.mxu0 %v220
    %248 = vmatmul.bf16.gmra.mxu0 %v238
    %v249 = vpop.f32.mrf.mxu0
    %v250 = vadd.f32 %v183, %v249
    %v251 = vpop.f32.mrf.mxu0
    %v252 = vadd.f32 %v183, %v251
    %253 = vdwg.mxu0
    %254 = vmatpush.bf16.msra.mxu0 0
    %255 = vmatpush.bf16.msra.mxu0 0
    %256 = vmatpush.bf16.msra.mxu0 0
    %257 = vmatpush.bf16.msra.mxu0 0
    %258 = vmatpush.bf16.msra.mxu0 0
    %259 = vmatpush.bf16.msra.mxu0 0
    %260 = vmatpush.bf16.msra.mxu0 %v225
    %261 = vmatpush.bf16.msra.mxu0 %v221
    %262 = vmatmul.bf16.gmra.mxu0 %v238
    %v263 = vpop.f32.mrf.mxu0
    %v264 = vadd.f32 %v184, %v263
    %v265 = vpop.f32.mrf.mxu0
    %v266 = vadd.f32 %v184, %v265
    %267 = vdwg.mxu0
    %268 = vmatpush.bf16.msra.mxu0 0
    %269 = vmatpush.bf16.msra.mxu0 0
    %270 = vmatpush.bf16.msra.mxu0 0
    %271 = vmatpush.bf16.msra.mxu0 0
    %272 = vmatpush.bf16.msra.mxu0 0
    %273 = vmatpush.bf16.msra.mxu0 0
    %274 = vmatpush.bf16.msra.mxu0 %v226
    %275 = vmatpush.bf16.msra.mxu0 %v222
    %276 = vmatmul.bf16.gmra.mxu0 %v238
    %v277 = vpop.f32.mrf.mxu0
    %v278 = vadd.f32 %v185, %v277
    %v279 = vpop.f32.mrf.mxu0
    %v280 = vadd.f32 %v185, %v279
    %281 = vdwg.mxu0
    %282 = vmatpush.bf16.msra.mxu0 0
    %283 = vmatpush.bf16.msra.mxu0 0
    %284 = vmatpush.bf16.msra.mxu0 0
    %285 = vmatpush.bf16.msra.mxu0 0
    %286 = vmatpush.bf16.msra.mxu0 0
    %287 = vmatpush.bf16.msra.mxu0 0
    %288 = vmatpush.bf16.msra.mxu0 %v227
    %289 = vmatpush.bf16.msra.mxu0 %v223
    %290 = vmatmul.bf16.gmra.mxu0 %v238
    %v291 = vpop.f32.mrf.mxu0
    %v292 = vadd.f32 %v186, %v291
    %v293 = vpop.f32.mrf.mxu0
    %v294 = vadd.f32 %v186, %v293
    %295 = vdwg.mxu0
    %v296 = vadd.f32 %v250, %v264
    %v297 = vadd.f32 %v296, %v278
    %v298 = vadd.f32 %v297, %v292
    %299 = vadd.xlane.f32.xlu0 %v298
    %v300 = vpop.xlane.xlu0 %299
    %v301 = vadd.f32 %v252, %v266
    %v302 = vadd.f32 %v301, %v280
    %v303 = vadd.f32 %v302, %v294
    %304 = vadd.xlane.f32.xlu0 %v303
    %v305 = vpop.xlane.xlu0 %304
    %v306 = vrcp.pop 512.0
    %v307 = vmul.f32 512.0, %v306
    %v308 = vsub.f32 1.0, %v307
    %v309 = vmul.f32 %v306, %v308
    %v310 = vadd.f32 %v306, %v309
    %vm311 = vweird.f32 %v306
    %v312 = vsel %vm311, %v306, %v310
    %v313 = vmul.f32 %v300, %v312
    %v314 = vmul.f32 %v305, %v312
    %v315 = vsub.f32 %v250, %v313
    %v316 = vsub.f32 %v264, %v313
    %v317 = vsub.f32 %v278, %v313
    %v318 = vsub.f32 %v292, %v313
    %v319 = vsub.f32 %v252, %v314
    %v320 = vsub.f32 %v266, %v314
    %v321 = vsub.f32 %v280, %v314
    %v322 = vsub.f32 %v294, %v314
    %v323 = vmul.f32 %v315, %v315
    %v324 = vmul.f32 %v316, %v316
    %v325 = vmul.f32 %v317, %v317
    %v326 = vmul.f32 %v318, %v318
    %v327 = vmul.f32 %v319, %v319
    %v328 = vmul.f32 %v320, %v320
    %v329 = vmul.f32 %v321, %v321
    %v330 = vmul.f32 %v322, %v322
    %v331 = vadd.f32 %v323, %v324
    %v332 = vadd.f32 %v331, %v325
    %v333 = vadd.f32 %v332, %v326
    %334 = vadd.xlane.f32.xlu0 %v333
    %v335 = vpop.xlane.xlu0 %334
    %v336 = vadd.f32 %v327, %v328
    %v337 = vadd.f32 %v336, %v329
    %v338 = vadd.f32 %v337, %v330
    %339 = vadd.xlane.f32.xlu0 %v338
    %v340 = vpop.xlane.xlu0 %339
    %v341 = vmul.f32 %v335, %v312
    %v342 = vmul.f32 %v340, %v312
    %v343 = vadd.f32 %v341, 1e-05
    %v344 = vadd.f32 %v342, 1e-05
    %v345 = vrsqrt.pop %v343
    %v346 = vmul.f32 %v345, %v343
    %v347 = vmul.f32 %v346, %v345
    %v348 = vmul.f32 0.5, %v347
    %v349 = vsub.f32 1.5, %v348
    %v350 = vmul.f32 %v345, %v349
    %vm351 = vweird.f32 %v343
    %vm352 = vweird.f32 %v345
    %vm353 = vmor %vm351, %vm352
    %v354 = vsel %vm353, %v345, %v350
    %v355 = vrsqrt.pop %v344
    %v356 = vmul.f32 %v355, %v344
    %v357 = vmul.f32 %v356, %v355
    %v358 = vmul.f32 0.5, %v357
    %v359 = vsub.f32 1.5, %v358
    %v360 = vmul.f32 %v355, %v359
    %vm361 = vweird.f32 %v344
    %vm362 = vweird.f32 %v355
    %vm363 = vmor %vm361, %vm362
    %v364 = vsel %vm363, %v355, %v360
    %v365 = vld [vmem:[#allocation8] sm:$0xf]
    %v367 = vperm.slane %v365, 0
    %v368 = vperm.slane %v365, 1
    %v369 = vperm.slane %v365, 2
    %v370 = vperm.slane %v365, 3
    %v375 = vmul.f32 %v354, %v367
    %v376 = vmul.f32 %v354, %v368
    %v377 = vmul.f32 %v354, %v369
    %v378 = vmul.f32 %v354, %v370
    %v379 = vmul.f32 %v364, %v367
    %v380 = vmul.f32 %v364, %v368
    %v381 = vmul.f32 %v364, %v369
    %v382 = vmul.f32 %v364, %v370
    %v383 = vmul.f32 %v315, %v375
    %v384 = vmul.f32 %v316, %v376
    %v385 = vmul.f32 %v317, %v377
    %v386 = vmul.f32 %v318, %v378
    %v387 = vmul.f32 %v319, %v379
    %v388 = vmul.f32 %v320, %v380
    %v389 = vmul.f32 %v321, %v381
    %v390 = vmul.f32 %v322, %v382
    %v391 = vld [vmem:[#allocation10] sm:$0xf]
    %v393 = vperm.slane %v391, 0
    %v394 = vperm.slane %v391, 1
    %v395 = vperm.slane %v391, 2
    %v396 = vperm.slane %v391, 3
    %v401 = vadd.f32 %v383, %v393
    %v402 = vadd.f32 %v384, %v394
    %v403 = vadd.f32 %v385, %v395
    %v404 = vadd.f32 %v386, %v396
    %v405 = vadd.f32 %v387, %v393
    %v406 = vadd.f32 %v388, %v394
    %v407 = vadd.f32 %v389, %v395
    %v408 = vadd.f32 %v390, %v396
    %vm409 = vcmp.gt.f32.partialorder %v401, 0.0
    %vm410 = vcmp.gt.f32.partialorder %v402, 0.0
    %vm411 = vcmp.gt.f32.partialorder %v403, 0.0
    %vm412 = vcmp.gt.f32.partialorder %v404, 0.0
    %vm413 = vcmp.gt.f32.partialorder %v405, 0.0
    %vm414 = vcmp.gt.f32.partialorder %v406, 0.0
    %vm415 = vcmp.gt.f32.partialorder %v407, 0.0
    %vm416 = vcmp.gt.f32.partialorder %v408, 0.0
    %v417 = vmul.f32 %v401, 0.2
    %v418 = vmul.f32 %v402, 0.2
    %v419 = vmul.f32 %v403, 0.2
    %v420 = vmul.f32 %v404, 0.2
    %v421 = vmul.f32 %v405, 0.2
    %v422 = vmul.f32 %v406, 0.2
    %v423 = vmul.f32 %v407, 0.2
    %v424 = vmul.f32 %v408, 0.2
    %v425 = vsel %vm409, %v401, %v417
    %v426 = vsel %vm410, %v402, %v418
    %v427 = vsel %vm411, %v403, %v419
    %v428 = vsel %vm412, %v404, %v420
    %v429 = vsel %vm413, %v405, %v421
    %v430 = vsel %vm414, %v406, %v422
    %v431 = vsel %vm415, %v407, %v423
    %v432 = vsel %vm416, %v408, %v424
    %v433 = vpack.c.bf16 %v429, %v425
    %v434 = vpack.c.bf16 %v430, %v426
    %v435 = vpack.c.bf16 %v431, %v427
    %v436 = vpack.c.bf16 %v432, %v428
    %v437 = vld [vmem:[#allocation11] sm:$0xff]
    %v438 = vld [vmem:[#allocation11 + $0x8] sm:$0xff]
    %v439 = vld [vmem:[#allocation11 + $0x10] sm:$0xff]
    %v440 = vld [vmem:[#allocation11 + $0x18] sm:$0xff]
    %v441 = vld [vmem:[#allocation11 + $0x20] sm:$0xff]
    %v442 = vld [vmem:[#allocation11 + $0x28] sm:$0xff]
    %v443 = vld [vmem:[#allocation11 + $0x30] sm:$0xff]
    %v444 = vld [vmem:[#allocation11 + $0x38] sm:$0xff]
    %v445 = vld [vmem:[#allocation11 + $0x40] sm:$0xff]
    %v446 = vld [vmem:[#allocation11 + $0x48] sm:$0xff]
    %v447 = vld [vmem:[#allocation11 + $0x50] sm:$0xff]
    %v448 = vld [vmem:[#allocation11 + $0x58] sm:$0xff]
    %v449 = vld [vmem:[#allocation11 + $0x60] sm:$0xff]
    %v450 = vld [vmem:[#allocation11 + $0x68] sm:$0xff]
    %v451 = vld [vmem:[#allocation11 + $0x70] sm:$0xff]
    %v452 = vld [vmem:[#allocation11 + $0x78] sm:$0xff]
    %v453 = vld [vmem:[#allocation11 + $0x80] sm:$0xff]
    %v454 = vld [vmem:[#allocation11 + $0x88] sm:$0xff]
    %v455 = vld [vmem:[#allocation11 + $0x90] sm:$0xff]
    %v456 = vld [vmem:[#allocation11 + $0x98] sm:$0xff]
    %v457 = vld [vmem:[#allocation11 + $0xa0] sm:$0xff]
    %v458 = vld [vmem:[#allocation11 + $0xa8] sm:$0xff]
    %v459 = vld [vmem:[#allocation11 + $0xb0] sm:$0xff]
    %v460 = vld [vmem:[#allocation11 + $0xb8] sm:$0xff]
    %v461 = vld [vmem:[#allocation11 + $0xc0] sm:$0xff]
    %v462 = vld [vmem:[#allocation11 + $0xc8] sm:$0xff]
    %v463 = vld [vmem:[#allocation11 + $0xd0] sm:$0xff]
    %v464 = vld [vmem:[#allocation11 + $0xd8] sm:$0xff]
    %v465 = vld [vmem:[#allocation11 + $0xe0] sm:$0xff]
    %v466 = vld [vmem:[#allocation11 + $0xe8] sm:$0xff]
    %v467 = vld [vmem:[#allocation11 + $0xf0] sm:$0xff]
    %v468 = vld [vmem:[#allocation11 + $0xf8] sm:$0xff]
    %v469 = vld [vmem:[#allocation11 + $0x100] sm:$0xff]
    %v470 = vld [vmem:[#allocation11 + $0x108] sm:$0xff]
    %v471 = vld [vmem:[#allocation11 + $0x110] sm:$0xff]
    %v472 = vld [vmem:[#allocation11 + $0x118] sm:$0xff]
    %v473 = vld [vmem:[#allocation11 + $0x120] sm:$0xff]
    %v474 = vld [vmem:[#allocation11 + $0x128] sm:$0xff]
    %v475 = vld [vmem:[#allocation11 + $0x130] sm:$0xff]
    %v476 = vld [vmem:[#allocation11 + $0x138] sm:$0xff]
    %v477 = vld [vmem:[#allocation11 + $0x140] sm:$0xff]
    %v478 = vld [vmem:[#allocation11 + $0x148] sm:$0xff]
    %v479 = vld [vmem:[#allocation11 + $0x150] sm:$0xff]
    %v480 = vld [vmem:[#allocation11 + $0x158] sm:$0xff]
    %v481 = vld [vmem:[#allocation11 + $0x160] sm:$0xff]
    %v482 = vld [vmem:[#allocation11 + $0x168] sm:$0xff]
    %v483 = vld [vmem:[#allocation11 + $0x170] sm:$0xff]
    %v484 = vld [vmem:[#allocation11 + $0x178] sm:$0xff]
    %v485 = vld [vmem:[#allocation11 + $0x180] sm:$0xff]
    %v486 = vld [vmem:[#allocation11 + $0x188] sm:$0xff]
    %v487 = vld [vmem:[#allocation11 + $0x190] sm:$0xff]
    %v488 = vld [vmem:[#allocation11 + $0x198] sm:$0xff]
    %v489 = vld [vmem:[#allocation11 + $0x1a0] sm:$0xff]
    %v490 = vld [vmem:[#allocation11 + $0x1a8] sm:$0xff]
    %v491 = vld [vmem:[#allocation11 + $0x1b0] sm:$0xff]
    %v492 = vld [vmem:[#allocation11 + $0x1b8] sm:$0xff]
    %v493 = vld [vmem:[#allocation11 + $0x1c0] sm:$0xff]
    %v494 = vld [vmem:[#allocation11 + $0x1c8] sm:$0xff]
    %v495 = vld [vmem:[#allocation11 + $0x1d0] sm:$0xff]
    %v496 = vld [vmem:[#allocation11 + $0x1d8] sm:$0xff]
    %v497 = vld [vmem:[#allocation11 + $0x1e0] sm:$0xff]
    %v498 = vld [vmem:[#allocation11 + $0x1e8] sm:$0xff]
    %v499 = vld [vmem:[#allocation11 + $0x1f0] sm:$0xff]
    %v500 = vld [vmem:[#allocation11 + $0x1f8] sm:$0xff]
    %v501 = vld [vmem:[%s6] sm:$0x3]
    %v503 = vperm.slane %v501, 0
    %v504 = vperm.slane %v501, 1
    %v571 = vunpack.c.l.b16 %v437
    %v572 = vunpack.c.h.b16 %v437
    %v573 = vunpack.c.l.b16 %v438
    %v574 = vunpack.c.h.b16 %v438
    %v575 = vunpack.c.l.b16 %v439
    %v576 = vunpack.c.h.b16 %v439
    %v577 = vunpack.c.l.b16 %v440
    %v578 = vunpack.c.h.b16 %v440
    %v579 = vunpack.c.l.b16 %v441
    %v580 = vunpack.c.h.b16 %v441
    %v581 = vunpack.c.l.b16 %v442
    %v582 = vunpack.c.h.b16 %v442
    %v583 = vunpack.c.l.b16 %v443
    %v584 = vunpack.c.h.b16 %v443
    %v585 = vunpack.c.l.b16 %v444
    %v586 = vunpack.c.h.b16 %v444
    %v587 = vunpack.c.l.b16 %v445
    %v588 = vunpack.c.h.b16 %v445
    %v589 = vunpack.c.l.b16 %v446
    %v590 = vunpack.c.h.b16 %v446
    %v591 = vunpack.c.l.b16 %v447
    %v592 = vunpack.c.h.b16 %v447
    %v593 = vunpack.c.l.b16 %v448
    %v594 = vunpack.c.h.b16 %v448
    %v595 = vunpack.c.l.b16 %v449
    %v596 = vunpack.c.h.b16 %v449
    %v597 = vunpack.c.l.b16 %v450
    %v598 = vunpack.c.h.b16 %v450
    %v599 = vunpack.c.l.b16 %v451
    %v600 = vunpack.c.h.b16 %v451
    %v601 = vunpack.c.l.b16 %v452
    %v602 = vunpack.c.h.b16 %v452
    %v603 = vunpack.c.l.b16 %v453
    %v604 = vunpack.c.h.b16 %v453
    %v605 = vunpack.c.l.b16 %v454
    %v606 = vunpack.c.h.b16 %v454
    %v607 = vunpack.c.l.b16 %v455
    %v608 = vunpack.c.h.b16 %v455
    %v609 = vunpack.c.l.b16 %v456
    %v610 = vunpack.c.h.b16 %v456
    %v611 = vunpack.c.l.b16 %v457
    %v612 = vunpack.c.h.b16 %v457
    %v613 = vunpack.c.l.b16 %v458
    %v614 = vunpack.c.h.b16 %v458
    %v615 = vunpack.c.l.b16 %v459
    %v616 = vunpack.c.h.b16 %v459
    %v617 = vunpack.c.l.b16 %v460
    %v618 = vunpack.c.h.b16 %v460
    %v619 = vunpack.c.l.b16 %v461
    %v620 = vunpack.c.h.b16 %v461
    %v621 = vunpack.c.l.b16 %v462
    %v622 = vunpack.c.h.b16 %v462
    %v623 = vunpack.c.l.b16 %v463
    %v624 = vunpack.c.h.b16 %v463
    %v625 = vunpack.c.l.b16 %v464
    %v626 = vunpack.c.h.b16 %v464
    %v627 = vunpack.c.l.b16 %v465
    %v628 = vunpack.c.h.b16 %v465
    %v629 = vunpack.c.l.b16 %v466
    %v630 = vunpack.c.h.b16 %v466
    %v631 = vunpack.c.l.b16 %v467
    %v632 = vunpack.c.h.b16 %v467
    %v633 = vunpack.c.l.b16 %v468
    %v634 = vunpack.c.h.b16 %v468
    %v635 = vunpack.c.l.b16 %v469
    %v636 = vunpack.c.h.b16 %v469
    %v637 = vunpack.c.l.b16 %v470
    %v638 = vunpack.c.h.b16 %v470
    %v639 = vunpack.c.l.b16 %v471
    %v640 = vunpack.c.h.b16 %v471
    %v641 = vunpack.c.l.b16 %v472
    %v642 = vunpack.c.h.b16 %v472
    %v643 = vunpack.c.l.b16 %v473
    %v644 = vunpack.c.h.b16 %v473
    %v645 = vunpack.c.l.b16 %v474
    %v646 = vunpack.c.h.b16 %v474
    %v647 = vunpack.c.l.b16 %v475
    %v648 = vunpack.c.h.b16 %v475
    %v649 = vunpack.c.l.b16 %v476
    %v650 = vunpack.c.h.b16 %v476
    %v651 = vunpack.c.l.b16 %v477
    %v652 = vunpack.c.h.b16 %v477
    %v653 = vunpack.c.l.b16 %v478
    %v654 = vunpack.c.h.b16 %v478
    %v655 = vunpack.c.l.b16 %v479
    %v656 = vunpack.c.h.b16 %v479
    %v657 = vunpack.c.l.b16 %v480
    %v658 = vunpack.c.h.b16 %v480
    %v659 = vunpack.c.l.b16 %v481
    %v660 = vunpack.c.h.b16 %v481
    %v661 = vunpack.c.l.b16 %v482
    %v662 = vunpack.c.h.b16 %v482
    %v663 = vunpack.c.l.b16 %v483
    %v664 = vunpack.c.h.b16 %v483
    %v665 = vunpack.c.l.b16 %v484
    %v666 = vunpack.c.h.b16 %v484
    %v667 = vunpack.c.l.b16 %v485
    %v668 = vunpack.c.h.b16 %v485
    %v669 = vunpack.c.l.b16 %v486
    %v670 = vunpack.c.h.b16 %v486
    %v671 = vunpack.c.l.b16 %v487
    %v672 = vunpack.c.h.b16 %v487
    %v673 = vunpack.c.l.b16 %v488
    %v674 = vunpack.c.h.b16 %v488
    %v675 = vunpack.c.l.b16 %v489
    %v676 = vunpack.c.h.b16 %v489
    %v677 = vunpack.c.l.b16 %v490
    %v678 = vunpack.c.h.b16 %v490
    %v679 = vunpack.c.l.b16 %v491
    %v680 = vunpack.c.h.b16 %v491
    %v681 = vunpack.c.l.b16 %v492
    %v682 = vunpack.c.h.b16 %v492
    %v683 = vunpack.c.l.b16 %v493
    %v684 = vunpack.c.h.b16 %v493
    %v685 = vunpack.c.l.b16 %v494
    %v686 = vunpack.c.h.b16 %v494
    %v687 = vunpack.c.l.b16 %v495
    %v688 = vunpack.c.h.b16 %v495
    %v689 = vunpack.c.l.b16 %v496
    %v690 = vunpack.c.h.b16 %v496
    %v691 = vunpack.c.l.b16 %v497
    %v692 = vunpack.c.h.b16 %v497
    %v693 = vunpack.c.l.b16 %v498
    %v694 = vunpack.c.h.b16 %v498
    %v695 = vunpack.c.l.b16 %v499
    %v696 = vunpack.c.h.b16 %v499
    %v697 = vunpack.c.l.b16 %v500
    %v698 = vunpack.c.h.b16 %v500
    %v699 = vpack.c.b16 %v573, %v571
    %v700 = vpack.c.b16 %v574, %v572
    %v701 = vpack.c.b16 %v577, %v575
    %v702 = vpack.c.b16 %v578, %v576
    %v703 = vpack.c.b16 %v581, %v579
    %v704 = vpack.c.b16 %v582, %v580
    %v705 = vpack.c.b16 %v585, %v583
    %v706 = vpack.c.b16 %v586, %v584
    %v707 = vpack.c.b16 %v589, %v587
    %v708 = vpack.c.b16 %v590, %v588
    %v709 = vpack.c.b16 %v593, %v591
    %v710 = vpack.c.b16 %v594, %v592
    %v711 = vpack.c.b16 %v597, %v595
    %v712 = vpack.c.b16 %v598, %v596
    %v713 = vpack.c.b16 %v601, %v599
    %v714 = vpack.c.b16 %v602, %v600
    %v715 = vpack.c.b16 %v605, %v603
    %v716 = vpack.c.b16 %v606, %v604
    %v717 = vpack.c.b16 %v609, %v607
    %v718 = vpack.c.b16 %v610, %v608
    %v719 = vpack.c.b16 %v613, %v611
    %v720 = vpack.c.b16 %v614, %v612
    %v721 = vpack.c.b16 %v617, %v615
    %v722 = vpack.c.b16 %v618, %v616
    %v723 = vpack.c.b16 %v621, %v619
    %v724 = vpack.c.b16 %v622, %v620
    %v725 = vpack.c.b16 %v625, %v623
    %v726 = vpack.c.b16 %v626, %v624
    %v727 = vpack.c.b16 %v629, %v627
    %v728 = vpack.c.b16 %v630, %v628
    %v729 = vpack.c.b16 %v633, %v631
    %v730 = vpack.c.b16 %v634, %v632
    %v731 = vpack.c.b16 %v637, %v635
    %v732 = vpack.c.b16 %v638, %v636
    %v733 = vpack.c.b16 %v641, %v639
    %v734 = vpack.c.b16 %v642, %v640
    %v735 = vpack.c.b16 %v645, %v643
    %v736 = vpack.c.b16 %v646, %v644
    %v737 = vpack.c.b16 %v649, %v647
    %v738 = vpack.c.b16 %v650, %v648
    %v739 = vpack.c.b16 %v653, %v651
    %v740 = vpack.c.b16 %v654, %v652
    %v741 = vpack.c.b16 %v657, %v655
    %v742 = vpack.c.b16 %v658, %v656
    %v743 = vpack.c.b16 %v661, %v659
    %v744 = vpack.c.b16 %v662, %v660
    %v745 = vpack.c.b16 %v665, %v663
    %v746 = vpack.c.b16 %v666, %v664
    %v747 = vpack.c.b16 %v669, %v667
    %v748 = vpack.c.b16 %v670, %v668
    %v749 = vpack.c.b16 %v673, %v671
    %v750 = vpack.c.b16 %v674, %v672
    %v751 = vpack.c.b16 %v677, %v675
    %v752 = vpack.c.b16 %v678, %v676
    %v753 = vpack.c.b16 %v681, %v679
    %v754 = vpack.c.b16 %v682, %v680
    %v755 = vpack.c.b16 %v685, %v683
    %v756 = vpack.c.b16 %v686, %v684
    %v757 = vpack.c.b16 %v689, %v687
    %v758 = vpack.c.b16 %v690, %v688
    %v759 = vpack.c.b16 %v693, %v691
    %v760 = vpack.c.b16 %v694, %v692
    %v761 = vpack.c.b16 %v697, %v695
    %v762 = vpack.c.b16 %v698, %v696
    %827 = vmatpush.bf16.msra.mxu0 %v713
    %828 = vmatpush.bf16.msra.mxu0 %v711
    %829 = vmatpush.bf16.msra.mxu0 %v709
    %830 = vmatpush.bf16.msra.mxu0 %v707
    %831 = vmatpush.bf16.msra.mxu0 %v705
    %832 = vmatpush.bf16.msra.mxu0 %v703
    %833 = vmatpush.bf16.msra.mxu0 %v701
    %834 = vmatpush.bf16.msra.mxu0 %v699
    %835 = vmatmul.bf16.gmra.mxu0 %v433
    %v836 = vpop.f32.mrf.mxu0
    %v837 = vadd.f32 %v503, %v836
    %v838 = vpop.f32.mrf.mxu0
    %v839 = vadd.f32 %v503, %v838
    %840 = vdwg.mxu0
    %841 = vmatpush.bf16.msra.mxu0 %v729
    %842 = vmatpush.bf16.msra.mxu0 %v727
    %843 = vmatpush.bf16.msra.mxu0 %v725
    %844 = vmatpush.bf16.msra.mxu0 %v723
    %845 = vmatpush.bf16.msra.mxu0 %v721
    %846 = vmatpush.bf16.msra.mxu0 %v719
    %847 = vmatpush.bf16.msra.mxu0 %v717
    %848 = vmatpush.bf16.msra.mxu0 %v715
    %849 = vmatmul.bf16.gmra.mxu0 %v434
    %v850 = vpop.f32.mrf.mxu0
    %v851 = vadd.f32 %v837, %v850
    %v852 = vpop.f32.mrf.mxu0
    %v853 = vadd.f32 %v839, %v852
    %854 = vdwg.mxu0
    %855 = vmatpush.bf16.msra.mxu0 %v745
    %856 = vmatpush.bf16.msra.mxu0 %v743
    %857 = vmatpush.bf16.msra.mxu0 %v741
    %858 = vmatpush.bf16.msra.mxu0 %v739
    %859 = vmatpush.bf16.msra.mxu0 %v737
    %860 = vmatpush.bf16.msra.mxu0 %v735
    %861 = vmatpush.bf16.msra.mxu0 %v733
    %862 = vmatpush.bf16.msra.mxu0 %v731
    %863 = vmatmul.bf16.gmra.mxu0 %v435
    %v864 = vpop.f32.mrf.mxu0
    %v865 = vadd.f32 %v851, %v864
    %v866 = vpop.f32.mrf.mxu0
    %v867 = vadd.f32 %v853, %v866
    %868 = vdwg.mxu0
    %869 = vmatpush.bf16.msra.mxu0 %v761
    %870 = vmatpush.bf16.msra.mxu0 %v759
    %871 = vmatpush.bf16.msra.mxu0 %v757
    %872 = vmatpush.bf16.msra.mxu0 %v755
    %873 = vmatpush.bf16.msra.mxu0 %v753
    %874 = vmatpush.bf16.msra.mxu0 %v751
    %875 = vmatpush.bf16.msra.mxu0 %v749
    %876 = vmatpush.bf16.msra.mxu0 %v747
    %877 = vmatmul.bf16.gmra.mxu0 %v436
    %v878 = vpop.f32.mrf.mxu0
    %v879 = vadd.f32 %v865, %v878
    %v880 = vpop.f32.mrf.mxu0
    %v881 = vadd.f32 %v867, %v880
    %882 = vdwg.mxu0
    %883 = vmatpush.bf16.msra.mxu0 %v714
    %884 = vmatpush.bf16.msra.mxu0 %v712
    %885 = vmatpush.bf16.msra.mxu0 %v710
    %886 = vmatpush.bf16.msra.mxu0 %v708
    %887 = vmatpush.bf16.msra.mxu0 %v706
    %888 = vmatpush.bf16.msra.mxu0 %v704
    %889 = vmatpush.bf16.msra.mxu0 %v702
    %890 = vmatpush.bf16.msra.mxu0 %v700
    %891 = vmatmul.bf16.gmra.mxu0 %v433
    %v892 = vpop.f32.mrf.mxu0
    %v893 = vadd.f32 %v504, %v892
    %v894 = vpop.f32.mrf.mxu0
    %v895 = vadd.f32 %v504, %v894
    %896 = vdwg.mxu0
    %897 = vmatpush.bf16.msra.mxu0 %v730
    %898 = vmatpush.bf16.msra.mxu0 %v728
    %899 = vmatpush.bf16.msra.mxu0 %v726
    %900 = vmatpush.bf16.msra.mxu0 %v724
    %901 = vmatpush.bf16.msra.mxu0 %v722
    %902 = vmatpush.bf16.msra.mxu0 %v720
    %903 = vmatpush.bf16.msra.mxu0 %v718
    %904 = vmatpush.bf16.msra.mxu0 %v716
    %905 = vmatmul.bf16.gmra.mxu0 %v434
    %v906 = vpop.f32.mrf.mxu0
    %v907 = vadd.f32 %v893, %v906
    %v908 = vpop.f32.mrf.mxu0
    %v909 = vadd.f32 %v895, %v908
    %910 = vdwg.mxu0
    %911 = vmatpush.bf16.msra.mxu0 %v746
    %912 = vmatpush.bf16.msra.mxu0 %v744
    %913 = vmatpush.bf16.msra.mxu0 %v742
    %914 = vmatpush.bf16.msra.mxu0 %v740
    %915 = vmatpush.bf16.msra.mxu0 %v738
    %916 = vmatpush.bf16.msra.mxu0 %v736
    %917 = vmatpush.bf16.msra.mxu0 %v734
    %918 = vmatpush.bf16.msra.mxu0 %v732
    %919 = vmatmul.bf16.gmra.mxu0 %v435
    %v920 = vpop.f32.mrf.mxu0
    %v921 = vadd.f32 %v907, %v920
    %v922 = vpop.f32.mrf.mxu0
    %v923 = vadd.f32 %v909, %v922
    %924 = vdwg.mxu0
    %925 = vmatpush.bf16.msra.mxu0 %v762
    %926 = vmatpush.bf16.msra.mxu0 %v760
    %927 = vmatpush.bf16.msra.mxu0 %v758
    %928 = vmatpush.bf16.msra.mxu0 %v756
    %929 = vmatpush.bf16.msra.mxu0 %v754
    %930 = vmatpush.bf16.msra.mxu0 %v752
    %931 = vmatpush.bf16.msra.mxu0 %v750
    %932 = vmatpush.bf16.msra.mxu0 %v748
    %933 = vmatmul.bf16.gmra.mxu0 %v436
    %v934 = vpop.f32.mrf.mxu0
    %v935 = vadd.f32 %v921, %v934
    %v936 = vpop.f32.mrf.mxu0
    %v937 = vadd.f32 %v923, %v936
    %938 = vdwg.mxu0
    %v939 = vadd.f32 %v879, %v935
    %940 = vadd.xlane.f32.xlu0 %v939
    %v941 = vpop.xlane.xlu0 %940
    %v942 = vadd.f32 %v881, %v937
    %943 = vadd.xlane.f32.xlu0 %v942
    %v944 = vpop.xlane.xlu0 %943
    %v945 = vrcp.pop 256.0
    %v946 = vmul.f32 256.0, %v945
    %v947 = vsub.f32 1.0, %v946
    %v948 = vmul.f32 %v945, %v947
    %v949 = vadd.f32 %v945, %v948
    %vm950 = vweird.f32 %v945
    %v951 = vsel %vm950, %v945, %v949
    %v952 = vmul.f32 %v941, %v951
    %v953 = vmul.f32 %v944, %v951
    %v954 = vsub.f32 %v879, %v952
    %v955 = vsub.f32 %v935, %v952
    %v956 = vsub.f32 %v881, %v953
    %v957 = vsub.f32 %v937, %v953
    %v958 = vmul.f32 %v954, %v954
    %v959 = vmul.f32 %v955, %v955
    %v960 = vmul.f32 %v956, %v956
    %v961 = vmul.f32 %v957, %v957
    %v962 = vadd.f32 %v958, %v959
    %963 = vadd.xlane.f32.xlu0 %v962
    %v964 = vpop.xlane.xlu0 %963
    %v965 = vadd.f32 %v960, %v961
    %966 = vadd.xlane.f32.xlu0 %v965
    %v967 = vpop.xlane.xlu0 %966
    %v968 = vmul.f32 %v964, %v951
    %v969 = vmul.f32 %v967, %v951
    %v970 = vadd.f32 %v968, 1e-05
    %v971 = vadd.f32 %v969, 1e-05
    %v972 = vrsqrt.pop %v970
    %v973 = vmul.f32 %v972, %v970
    %v974 = vmul.f32 %v973, %v972
    %v975 = vmul.f32 0.5, %v974
    %v976 = vsub.f32 1.5, %v975
    %v977 = vmul.f32 %v972, %v976
    %vm978 = vweird.f32 %v970
    %vm979 = vweird.f32 %v972
    %vm980 = vmor %vm978, %vm979
    %v981 = vsel %vm980, %v972, %v977
    %v982 = vrsqrt.pop %v971
    %v983 = vmul.f32 %v982, %v971
    %v984 = vmul.f32 %v983, %v982
    %v985 = vmul.f32 0.5, %v984
    %v986 = vsub.f32 1.5, %v985
    %v987 = vmul.f32 %v982, %v986
    %vm988 = vweird.f32 %v971
    %vm989 = vweird.f32 %v982
    %vm990 = vmor %vm988, %vm989
    %v991 = vsel %vm990, %v982, %v987
    %v992 = vld [vmem:[%s7] sm:$0x3]
    %v994 = vperm.slane %v992, 0
    %v995 = vperm.slane %v992, 1
    %v998 = vmul.f32 %v981, %v994
    %v999 = vmul.f32 %v981, %v995
    %v1000 = vmul.f32 %v991, %v994
    %v1001 = vmul.f32 %v991, %v995
    %v1002 = vmul.f32 %v954, %v998
    %v1003 = vmul.f32 %v955, %v999
    %v1004 = vmul.f32 %v956, %v1000
    %v1005 = vmul.f32 %v957, %v1001
    %v1006 = vld [vmem:[%s8] sm:$0x3]
    %v1008 = vperm.slane %v1006, 0
    %v1009 = vperm.slane %v1006, 1
    %v1012 = vadd.f32 %v1002, %v1008
    %v1013 = vadd.f32 %v1003, %v1009
    %v1014 = vadd.f32 %v1004, %v1008
    %v1015 = vadd.f32 %v1005, %v1009
    %vm1016 = vcmp.gt.f32.partialorder %v1012, 0.0
    %vm1017 = vcmp.gt.f32.partialorder %v1013, 0.0
    %vm1018 = vcmp.gt.f32.partialorder %v1014, 0.0
    %vm1019 = vcmp.gt.f32.partialorder %v1015, 0.0
    %v1020 = vmul.f32 %v1012, 0.2
    %v1021 = vmul.f32 %v1013, 0.2
    %v1022 = vmul.f32 %v1014, 0.2
    %v1023 = vmul.f32 %v1015, 0.2
    %v1024 = vsel %vm1016, %v1012, %v1020
    %v1025 = vsel %vm1017, %v1013, %v1021
    %v1026 = vsel %vm1018, %v1014, %v1022
    %v1027 = vsel %vm1019, %v1015, %v1023
    %v1028 = vpack.c.bf16 %v1026, %v1024
    %v1029 = vpack.c.bf16 %v1027, %v1025
    %v1030 = vld [vmem:[#allocation13] sm:$0xf]
    %v1031 = vld [vmem:[#allocation13 + $0x4] sm:$0xf]
    %v1032 = vld [vmem:[#allocation13 + $0x8] sm:$0xf]
    %v1033 = vld [vmem:[#allocation13 + $0xc] sm:$0xf]
    %v1034 = vld [vmem:[#allocation13 + $0x10] sm:$0xf]
    %v1035 = vld [vmem:[#allocation13 + $0x14] sm:$0xf]
    %v1036 = vld [vmem:[#allocation13 + $0x18] sm:$0xf]
    %v1037 = vld [vmem:[#allocation13 + $0x1c] sm:$0xf]
    %v1038 = vld [vmem:[#allocation13 + $0x20] sm:$0xf]
    %v1039 = vld [vmem:[#allocation13 + $0x24] sm:$0xf]
    %v1040 = vld [vmem:[#allocation13 + $0x28] sm:$0xf]
    %v1041 = vld [vmem:[#allocation13 + $0x2c] sm:$0xf]
    %v1042 = vld [vmem:[#allocation13 + $0x30] sm:$0xf]
    %v1043 = vld [vmem:[#allocation13 + $0x34] sm:$0xf]
    %v1044 = vld [vmem:[#allocation13 + $0x38] sm:$0xf]
    %v1045 = vld [vmem:[#allocation13 + $0x3c] sm:$0xf]
    %v1046 = vld [vmem:[#allocation13 + $0x40] sm:$0xf]
    %v1047 = vld [vmem:[#allocation13 + $0x44] sm:$0xf]
    %v1048 = vld [vmem:[#allocation13 + $0x48] sm:$0xf]
    %v1049 = vld [vmem:[#allocation13 + $0x4c] sm:$0xf]
    %v1050 = vld [vmem:[#allocation13 + $0x50] sm:$0xf]
    %v1051 = vld [vmem:[#allocation13 + $0x54] sm:$0xf]
    %v1052 = vld [vmem:[#allocation13 + $0x58] sm:$0xf]
    %v1053 = vld [vmem:[#allocation13 + $0x5c] sm:$0xf]
    %v1054 = vld [vmem:[#allocation13 + $0x60] sm:$0xf]
    %v1055 = vld [vmem:[#allocation13 + $0x64] sm:$0xf]
    %v1056 = vld [vmem:[#allocation13 + $0x68] sm:$0xf]
    %v1057 = vld [vmem:[#allocation13 + $0x6c] sm:$0xf]
    %v1058 = vld [vmem:[#allocation13 + $0x70] sm:$0xf]
    %v1059 = vld [vmem:[#allocation13 + $0x74] sm:$0xf]
    %v1060 = vld [vmem:[#allocation13 + $0x78] sm:$0xf]
    %v1061 = vld [vmem:[#allocation13 + $0x7c] sm:$0xf]
    %v1062 = vld [vmem:[%s10] sm:$0x1]
    %v1064 = vperm.slane %v1062, 0
    %v1098 = vunpack.c.l.b16 %v1030
    %v1099 = vunpack.c.l.b16 %v1031
    %v1100 = vunpack.c.l.b16 %v1032
    %v1101 = vunpack.c.l.b16 %v1033
    %v1102 = vunpack.c.l.b16 %v1034
    %v1103 = vunpack.c.l.b16 %v1035
    %v1104 = vunpack.c.l.b16 %v1036
    %v1105 = vunpack.c.l.b16 %v1037
    %v1106 = vunpack.c.l.b16 %v1038
    %v1107 = vunpack.c.l.b16 %v1039
    %v1108 = vunpack.c.l.b16 %v1040
    %v1109 = vunpack.c.l.b16 %v1041
    %v1110 = vunpack.c.l.b16 %v1042
    %v1111 = vunpack.c.l.b16 %v1043
    %v1112 = vunpack.c.l.b16 %v1044
    %v1113 = vunpack.c.l.b16 %v1045
    %v1114 = vunpack.c.l.b16 %v1046
    %v1115 = vunpack.c.l.b16 %v1047
    %v1116 = vunpack.c.l.b16 %v1048
    %v1117 = vunpack.c.l.b16 %v1049
    %v1118 = vunpack.c.l.b16 %v1050
    %v1119 = vunpack.c.l.b16 %v1051
    %v1120 = vunpack.c.l.b16 %v1052
    %v1121 = vunpack.c.l.b16 %v1053
    %v1122 = vunpack.c.l.b16 %v1054
    %v1123 = vunpack.c.l.b16 %v1055
    %v1124 = vunpack.c.l.b16 %v1056
    %v1125 = vunpack.c.l.b16 %v1057
    %v1126 = vunpack.c.l.b16 %v1058
    %v1127 = vunpack.c.l.b16 %v1059
    %v1128 = vunpack.c.l.b16 %v1060
    %v1129 = vunpack.c.l.b16 %v1061
    %v1130 = vpack.c.b16 %v1099, %v1098
    %v1131 = vpack.c.b16 %v1101, %v1100
    %v1132 = vpack.c.b16 %v1103, %v1102
    %v1133 = vpack.c.b16 %v1105, %v1104
    %v1134 = vpack.c.b16 %v1107, %v1106
    %v1135 = vpack.c.b16 %v1109, %v1108
    %v1136 = vpack.c.b16 %v1111, %v1110
    %v1137 = vpack.c.b16 %v1113, %v1112
    %v1138 = vpack.c.b16 %v1115, %v1114
    %v1139 = vpack.c.b16 %v1117, %v1116
    %v1140 = vpack.c.b16 %v1119, %v1118
    %v1141 = vpack.c.b16 %v1121, %v1120
    %v1142 = vpack.c.b16 %v1123, %v1122
    %v1143 = vpack.c.b16 %v1125, %v1124
    %v1144 = vpack.c.b16 %v1127, %v1126
    %v1145 = vpack.c.b16 %v1129, %v1128
    %1162 = vmatpush.bf16.msra.mxu0 %v1137
    %1163 = vmatpush.bf16.msra.mxu0 %v1136
    %1164 = vmatpush.bf16.msra.mxu0 %v1135
    %1165 = vmatpush.bf16.msra.mxu0 %v1134
    %1166 = vmatpush.bf16.msra.mxu0 %v1133
    %1167 = vmatpush.bf16.msra.mxu0 %v1132
    %1168 = vmatpush.bf16.msra.mxu0 %v1131
    %1169 = vmatpush.bf16.msra.mxu0 %v1130
    %1170 = vmatmul.bf16.gmra.mxu0 %v1028
    %v1171 = vpop.f32.mrf.mxu0
    %v1172 = vadd.f32 %v1064, %v1171
    %v1173 = vpop.f32.mrf.mxu0
    %v1174 = vadd.f32 %v1064, %v1173
    %1175 = vdwg.mxu0
    %1176 = vmatpush.bf16.msra.mxu0 %v1145
    %1177 = vmatpush.bf16.msra.mxu0 %v1144
    %1178 = vmatpush.bf16.msra.mxu0 %v1143
    %1179 = vmatpush.bf16.msra.mxu0 %v1142
    %1180 = vmatpush.bf16.msra.mxu0 %v1141
    %1181 = vmatpush.bf16.msra.mxu0 %v1140
    %1182 = vmatpush.bf16.msra.mxu0 %v1139
    %1183 = vmatpush.bf16.msra.mxu0 %v1138
    %1184 = vmatmul.bf16.gmra.mxu0 %v1029
    %v1185 = vpop.f32.mrf.mxu0
    %v1186 = vadd.f32 %v1172, %v1185
    %v1187 = vpop.f32.mrf.mxu0
    %v1188 = vadd.f32 %v1174, %v1187
    %1189 = vdwg.mxu0
    %1190 = vadd.xlane.f32.xlu0 %v1186
    %v1191 = vpop.xlane.xlu0 %1190
    %1192 = vadd.xlane.f32.xlu0 %v1188
    %v1193 = vpop.xlane.xlu0 %1192
    %v1194 = vrcp.pop 128.0
    %v1195 = vmul.f32 128.0, %v1194
    %v1196 = vsub.f32 1.0, %v1195
    %v1197 = vmul.f32 %v1194, %v1196
    %v1198 = vadd.f32 %v1194, %v1197
    %vm1199 = vweird.f32 %v1194
    %v1200 = vsel %vm1199, %v1194, %v1198
    %v1201 = vmul.f32 %v1191, %v1200
    %v1202 = vmul.f32 %v1193, %v1200
    %v1203 = vsub.f32 %v1186, %v1201
    %v1204 = vsub.f32 %v1188, %v1202
    %v1205 = vmul.f32 %v1203, %v1203
    %v1206 = vmul.f32 %v1204, %v1204
    %1207 = vadd.xlane.f32.xlu0 %v1205
    %v1208 = vpop.xlane.xlu0 %1207
    %1209 = vadd.xlane.f32.xlu0 %v1206
    %v1210 = vpop.xlane.xlu0 %1209
    %v1211 = vmul.f32 %v1208, %v1200
    %v1212 = vmul.f32 %v1210, %v1200
    %v1213 = vadd.f32 %v1211, 1e-05
    %v1214 = vadd.f32 %v1212, 1e-05
    %v1215 = vrsqrt.pop %v1213
    %v1216 = vmul.f32 %v1215, %v1213
    %v1217 = vmul.f32 %v1216, %v1215
    %v1218 = vmul.f32 0.5, %v1217
    %v1219 = vsub.f32 1.5, %v1218
    %v1220 = vmul.f32 %v1215, %v1219
    %vm1221 = vweird.f32 %v1213
    %vm1222 = vweird.f32 %v1215
    %vm1223 = vmor %vm1221, %vm1222
    %v1224 = vsel %vm1223, %v1215, %v1220
    %v1225 = vrsqrt.pop %v1214
    %v1226 = vmul.f32 %v1225, %v1214
    %v1227 = vmul.f32 %v1226, %v1225
    %v1228 = vmul.f32 0.5, %v1227
    %v1229 = vsub.f32 1.5, %v1228
    %v1230 = vmul.f32 %v1225, %v1229
    %vm1231 = vweird.f32 %v1214
    %vm1232 = vweird.f32 %v1225
    %vm1233 = vmor %vm1231, %vm1232
    %v1234 = vsel %vm1233, %v1225, %v1230
    %v1235 = vld [vmem:[%s11] sm:$0x1]
    %v1237 = vperm.slane %v1235, 0
    %v1239 = vmul.f32 %v1224, %v1237
    %v1240 = vmul.f32 %v1234, %v1237
    %v1241 = vmul.f32 %v1203, %v1239
    %v1242 = vmul.f32 %v1204, %v1240
    %v1243 = vld [vmem:[%s12] sm:$0x1]
    %v1245 = vperm.slane %v1243, 0
    %v1247 = vadd.f32 %v1241, %v1245
    %v1248 = vadd.f32 %v1242, %v1245
    %vm1249 = vcmp.gt.f32.partialorder %v1247, 0.0
    %vm1250 = vcmp.gt.f32.partialorder %v1248, 0.0
    %v1251 = vmul.f32 %v1247, 0.2
    %v1252 = vmul.f32 %v1248, 0.2
    %v1253 = vsel %vm1249, %v1247, %v1251
    %v1254 = vsel %vm1250, %v1248, %v1252
    %v1255 = vpack.c.bf16 %v1254, %v1253
    %v1256 = vld [vmem:[#allocation14] sm:$0xf]
    %v1257 = vld [vmem:[#allocation14 + $0x4] sm:$0xf]
    %v1258 = vld [vmem:[#allocation14 + $0x8] sm:$0xf]
    %v1259 = vld [vmem:[#allocation14 + $0xc] sm:$0xf]
    %v1260 = vld [vmem:[#allocation14 + $0x10] sm:$0xf]
    %v1261 = vld [vmem:[#allocation14 + $0x14] sm:$0xf]
    %v1262 = vld [vmem:[#allocation14 + $0x18] sm:$0xf]
    %v1263 = vld [vmem:[#allocation14 + $0x1c] sm:$0xf]
    %v1264 = vld [vmem:[#allocation14 + $0x20] sm:$0xf]
    %v1265 = vld [vmem:[#allocation14 + $0x24] sm:$0xf]
    %v1266 = vld [vmem:[#allocation14 + $0x28] sm:$0xf]
    %v1267 = vld [vmem:[#allocation14 + $0x2c] sm:$0xf]
    %v1268 = vld [vmem:[#allocation14 + $0x30] sm:$0xf]
    %v1269 = vld [vmem:[#allocation14 + $0x34] sm:$0xf]
    %v1270 = vld [vmem:[#allocation14 + $0x38] sm:$0xf]
    %v1271 = vld [vmem:[#allocation14 + $0x3c] sm:$0xf]
    %v1272 = vld [vmem:[%s14] sm:$0x1]
    %v1274 = vperm.slane %v1272, 0
    %v1292 = vunpack.c.l.b16 %v1256
    %v1293 = vunpack.c.l.b16 %v1257
    %v1294 = vunpack.c.l.b16 %v1258
    %v1295 = vunpack.c.l.b16 %v1259
    %v1296 = vunpack.c.l.b16 %v1260
    %v1297 = vunpack.c.l.b16 %v1261
    %v1298 = vunpack.c.l.b16 %v1262
    %v1299 = vunpack.c.l.b16 %v1263
    %v1300 = vunpack.c.l.b16 %v1264
    %v1301 = vunpack.c.l.b16 %v1265
    %v1302 = vunpack.c.l.b16 %v1266
    %v1303 = vunpack.c.l.b16 %v1267
    %v1304 = vunpack.c.l.b16 %v1268
    %v1305 = vunpack.c.l.b16 %v1269
    %v1306 = vunpack.c.l.b16 %v1270
    %v1307 = vunpack.c.l.b16 %v1271
    %v1308 = vpack.c.b16 %v1293, %v1292
    %v1309 = vpack.c.b16 %v1295, %v1294
    %v1310 = vpack.c.b16 %v1297, %v1296
    %v1311 = vpack.c.b16 %v1299, %v1298
    %v1312 = vpack.c.b16 %v1301, %v1300
    %v1313 = vpack.c.b16 %v1303, %v1302
    %v1314 = vpack.c.b16 %v1305, %v1304
    %v1315 = vpack.c.b16 %v1307, %v1306
    %1324 = vmatpush.bf16.msra.mxu0 %v1315
    %1325 = vmatpush.bf16.msra.mxu0 %v1314
    %1326 = vmatpush.bf16.msra.mxu0 %v1313
    %1327 = vmatpush.bf16.msra.mxu0 %v1312
    %1328 = vmatpush.bf16.msra.mxu0 %v1311
    %1329 = vmatpush.bf16.msra.mxu0 %v1310
    %1330 = vmatpush.bf16.msra.mxu0 %v1309
    %1331 = vmatpush.bf16.msra.mxu0 %v1308
    %1332 = vmatmul.bf16.gmra.mxu0 %v1255
    %v1333 = vpop.f32.mrf.mxu0
    %v1334 = vadd.f32 %v1274, %v1333
    %v1335 = vpop.f32.mrf.mxu0
    %v1336 = vadd.f32 %v1274, %v1335
    %1337 = vdwg.mxu0
    %1338 = vst [vmem:[#allocation16] sm:$0xff] %v1334
    %1339 = vst [vmem:[#allocation16 + $0x8] sm:$0xff] %v1336
    // Predicated region
    $region94: #{tpu_custom_call.1} parent=1 // pred_check
      _
    $region95: #{tpu_custom_call.1} parent=1 // pred_check_branch
      %1341 = sbr.rel (0) target = $region97
    $region96: #{tpu_custom_call.1} parent=1 // pred_region
      %1343 = vsyncadd [#allocation4], 0
      %s1344 = sshll.u32 [#allocation16], 4
      %s1345 = int_to_ptr.vmem [resolvable:$true] %s1344
      %s1346 = sshll.u32 %s15, 4
      %s1347 = int_to_ptr.hbm [resolvable:$true] %s1346
      %1352 = dma.vmem_to_hbm [thread:$0]  %s1345, 256, %s1347, [#allocation4], 128, 128, 8
    $region97: #{tpu_custom_call.1} parent=1 // pred_fallthru
      _
    // Predicated region
    $region98: #{tpu_custom_call.1} parent=1 // pred_check
      _
    $region99: #{tpu_custom_call.1} parent=1 // pred_check_branch
      %1354 = sbr.rel (0) target = $region101
    $region100: #{tpu_custom_call.1} parent=1 // pred_region
      %1356 = dma.done [#allocation4], 256
    $region101: #{tpu_custom_call.1} parent=1 // pred_fallthru
      _
    %1357 = vsyncpa [#allocation3], 1
    %1358 = vsyncpa [#allocation6], 1
    %1359 = vsyncpa [#allocation9], 1
    %1360 = vsyncpa [#allocation12], 1
    %1361 = vsyncpa [#allocation15], 1
    %1362 = vsyncpa [#allocation4], 1

</llo_original>
